<compile_context>
chip_gen: v6e
topology: v6e:2x2x1
jax: 0.10.0
libtpu: 0.0.40
codegen_flags: <defaults>
</compile_context>

<pallas_src>
import math

import jax
import jax.numpy as jnp
from jax import lax
from jax.experimental import pallas as pl
from jax.experimental.pallas import tpu as pltpu

# ---- config (small, consistent with the module) ---------------------------
BATCH = 2
SEQ = 8
HIDDEN = 32
NUM_HEADS = 4
HEAD_DIM = HIDDEN // NUM_HEADS  # attention_head_size


def _bert_self_attention_kernel(hs_ref, w_qkv_ref, b_qkv_ref, out_ref):
    """Single invocation over the whole (flattened) batch.

    hs_ref   : (B*S, H)   flattened hidden states
    w_qkv_ref: (H, 3H)    fused [Wq | Wk | Wv] (input-major: y = x @ W + b)
    b_qkv_ref: (1, 3H)    fused [bq | bk | bv]
    out_ref  : (B*S, H)   context layer (heads re-merged, flattened batch)
    """
    hs = hs_ref[...]                                            # (B*S, H) f32

    # Fused QKV projection: one MXU matmul instead of three.
    qkv = jnp.dot(hs, w_qkv_ref[...],
                  preferred_element_type=jnp.float32) + b_qkv_ref[...]  # (B*S, 3H)

    # Hoisted q/k/v slabs; 1/sqrt(d) folded into q ONCE (one VPU multiply).
    scale = 1.0 / math.sqrt(HEAD_DIM)
    q = qkv[:, 0 * HIDDEN:1 * HIDDEN] * scale                   # (B*S, H)
    k = qkv[:, 1 * HIDDEN:2 * HIDDEN]                           # (B*S, H)
    v = qkv[:, 2 * HIDDEN:3 * HIDDEN]                           # (B*S, H)

    ctx_heads = []
    for h in range(NUM_HEADS):
        lo = h * HEAD_DIM
        # Leading-axis reshape only (no lane/sublane relayout): (B*S,d)->(B,S,d)
        qh = q[:, lo:lo + HEAD_DIM].reshape(BATCH, SEQ, HEAD_DIM)
        kh = k[:, lo:lo + HEAD_DIM].reshape(BATCH, SEQ, HEAD_DIM)
        vh = v[:, lo:lo + HEAD_DIM].reshape(BATCH, SEQ, HEAD_DIM)

        # Batched over B; contraction on the LAST dim of both operands, so no
        # materialized kh.T / XLU transpose.
        scores = lax.dot_general(qh, kh, (((2,), (2,)), ((0,), (0,))),
                                 preferred_element_type=jnp.float32)   # (B,S,S)
        scores = scores - jnp.max(scores, axis=-1, keepdims=True)
        probs = jnp.exp(scores)
        # Exact reciprocal (EUP slot); divide folded into one multiply below.
        inv = pl.reciprocal(jnp.sum(probs, axis=-1, keepdims=True))     # (B,S,1)
        # (dropout on `probs` is identity in eval mode)
        ctx = lax.dot_general(probs, vh, (((2,), (1,)), ((0,), (0,))),
                              preferred_element_type=jnp.float32) * inv  # (B,S,d)
        ctx_heads.append(ctx.reshape(BATCH * SEQ, HEAD_DIM))

    # One lane-dense, full-width store of the merged context.
    out_ref[...] = jnp.concatenate(ctx_heads, axis=-1).astype(out_ref.dtype)


def bert_self_attention(hidden_states, wq, bq, wk, bk, wv, bv):
    """hidden_states: (B, S, H); weights (H, H) input-major; biases (1, H)."""
    B, S, H = hidden_states.shape
    assert (B, S, H) == (BATCH, SEQ, HIDDEN)

    # Fuse the three projections once in the wrapper (XLA folds this for
    # static weights).
    w_qkv = jnp.concatenate([wq, wk, wv], axis=1)   # (H, 3H)
    b_qkv = jnp.concatenate([bq, bk, bv], axis=1)   # (1, 3H)
    hs2d = hidden_states.reshape(B * S, H)          # 16 sublanes per MXU pass

    vmem_spec = pl.BlockSpec(memory_space=pltpu.MemorySpace.VMEM)
    out2d = pl.pallas_call(
        _bert_self_attention_kernel,
        out_shape=jax.ShapeDtypeStruct((B * S, H), hidden_states.dtype),
        in_specs=[vmem_spec, vmem_spec, vmem_spec],
        out_specs=vmem_spec,
    )(hs2d, w_qkv, b_qkv)

    return out2d.reshape(B, S, H)


def _reference(hidden_states, wq, bq, wk, bk, wv, bv):
    """Plain-JAX reference reproducing the PyTorch module semantics."""
    B, S, H = hidden_states.shape
    q = hidden_states @ wq + bq
    k = hidden_states @ wk + bk
    v = hidden_states @ wv + bv

    def split(x):  # transpose_for_scores: (B,S,H) -> (B,nh,S,d)
        return x.reshape(B, S, NUM_HEADS, HEAD_DIM).transpose(0, 2, 1, 3)

    qh, kh, vh = split(q), split(k), split(v)
    scores = jnp.einsum("bhqd,bhkd->bhqk", qh, kh) / math.sqrt(HEAD_DIM)
    probs = jax.nn.softmax(scores, axis=-1)
    ctx = jnp.einsum("bhqk,bhkd->bhqd", probs, vh)
    # permute back + merge heads
    return ctx.transpose(0, 2, 1, 3).reshape(B, S, H)


if __name__ == "__main__":
    key = jax.random.PRNGKey(0)
    k_hs, k_q, k_k, k_v, k_bq, k_bk, k_bv = jax.random.split(key, 7)

    hidden_states = jax.random.normal(k_hs, (BATCH, SEQ, HIDDEN), jnp.float32)

    # Deterministic parameter init (nn.Linear(H, H) x3). Stored input-major.
    lim = 1.0 / math.sqrt(HIDDEN)
    wq = jax.random.uniform(k_q, (HIDDEN, HIDDEN), jnp.float32, -lim, lim)
    wk = jax.random.uniform(k_k, (HIDDEN, HIDDEN), jnp.float32, -lim, lim)
    wv = jax.random.uniform(k_v, (HIDDEN, HIDDEN), jnp.float32, -lim, lim)
    bq = jax.random.uniform(k_bq, (1, HIDDEN), jnp.float32, -lim, lim)
    bk = jax.random.uniform(k_bk, (1, HIDDEN), jnp.float32, -lim, lim)
    bv = jax.random.uniform(k_bv, (1, HIDDEN), jnp.float32, -lim, lim)

    out = bert_self_attention(hidden_states, wq, bq, wk, bk, wv, bv)
    out = jax.block_until_ready(out)

    ref = _reference(hidden_states, wq, bq, wk, bk, wv, bv)
    assert out.shape == (BATCH, SEQ, HIDDEN)
    assert jnp.allclose(out, ref, atol=1e-4, rtol=1e-4), "mismatch vs reference"

    print("KERNEL_OK")
</pallas_src>

<mosaic_0001>
module attributes {stable_mosaic.version = 11 : i64} {
  func.func @_bert_self_attention_kernel(%arg0: memref<16x32xf32, #tpu.memory_space<vmem>>, %arg1: memref<32x96xf32, #tpu.memory_space<vmem>>, %arg2: memref<1x96xf32, #tpu.memory_space<vmem>>, %arg3: memref<16x32xf32, #tpu.memory_space<vmem>>) attributes {dimension_semantics = [], scalar_prefetch = 0 : i64, scratch_operands = 0 : i64, tpu.core_type = #tpu.core_type<tc>} {
    %c0 = arith.constant 0 : index
    %c0_0 = arith.constant 0 : index
    %0 = vector.load %arg0[%c0, %c0_0] : memref<16x32xf32, #tpu.memory_space<vmem>>, vector<16x32xf32>
    %c0_1 = arith.constant 0 : index
    %c0_2 = arith.constant 0 : index
    %1 = vector.load %arg1[%c0_1, %c0_2] : memref<32x96xf32, #tpu.memory_space<vmem>>, vector<32x96xf32>
    %cst = arith.constant dense<0.000000e+00> : vector<16x96xf32>
    %2 = tpu.matmul %0, %1, %cst {dimension_numbers = #tpu.dot_dimension_numbers<[1], [0], [0], [1], [0, 0, 1, 1], [], []>} : vector<16x32xf32>, vector<32x96xf32>, vector<16x96xf32> -> vector<16x96xf32>
    %c0_3 = arith.constant 0 : index
    %c0_4 = arith.constant 0 : index
    %3 = vector.load %arg2[%c0_3, %c0_4] : memref<1x96xf32, #tpu.memory_space<vmem>>, vector<1x96xf32>
    %4 = vector.broadcast %3 : vector<1x96xf32> to vector<16x96xf32>
    %5 = arith.addf %2, %4 : vector<16x96xf32>
    %6 = vector.extract_strided_slice %5 {offsets = [0, 0], sizes = [16, 32], strides = [1, 1]} : vector<16x96xf32> to vector<16x32xf32>
    %cst_5 = arith.constant 0.353553385 : f32
    %7 = vector.broadcast %cst_5 : f32 to vector<16x32xf32>
    %8 = arith.mulf %6, %7 : vector<16x32xf32>
    %9 = vector.extract_strided_slice %5 {offsets = [0, 32], sizes = [16, 32], strides = [1, 1]} : vector<16x96xf32> to vector<16x32xf32>
    %10 = vector.extract_strided_slice %5 {offsets = [0, 64], sizes = [16, 32], strides = [1, 1]} : vector<16x96xf32> to vector<16x32xf32>
    %11 = vector.extract_strided_slice %8 {offsets = [0, 0], sizes = [16, 8], strides = [1, 1]} : vector<16x32xf32> to vector<16x8xf32>
    %12 = vector.shape_cast %11 : vector<16x8xf32> to vector<2x8x8xf32>
    %13 = vector.extract_strided_slice %9 {offsets = [0, 0], sizes = [16, 8], strides = [1, 1]} : vector<16x32xf32> to vector<16x8xf32>
    %14 = vector.shape_cast %13 : vector<16x8xf32> to vector<2x8x8xf32>
    %15 = vector.extract_strided_slice %10 {offsets = [0, 0], sizes = [16, 8], strides = [1, 1]} : vector<16x32xf32> to vector<16x8xf32>
    %16 = vector.shape_cast %15 : vector<16x8xf32> to vector<2x8x8xf32>
    %cst_6 = arith.constant dense<0.000000e+00> : vector<2x8x8xf32>
    %17 = tpu.matmul %12, %14, %cst_6 {dimension_numbers = #tpu.dot_dimension_numbers<[2], [2], [1], [1], [0, 0, 0, 1, 1, 1], [0], [0]>} : vector<2x8x8xf32>, vector<2x8x8xf32>, vector<2x8x8xf32> -> vector<2x8x8xf32>
    %cst_7 = arith.constant dense<0xFF800000> : vector<2x8xf32>
    %18 = vector.multi_reduction <maximumf>, %17, %cst_7 [2] : vector<2x8x8xf32> to vector<2x8xf32>
    %19 = vector.shape_cast %18 : vector<2x8xf32> to vector<2x8x1xf32>
    %20 = vector.broadcast %19 : vector<2x8x1xf32> to vector<2x8x8xf32>
    %21 = arith.subf %17, %20 : vector<2x8x8xf32>
    %22 = math.exp %21 : vector<2x8x8xf32>
    %cst_8 = arith.constant dense<0.000000e+00> : vector<2x8xf32>
    %23 = vector.multi_reduction <add>, %22, %cst_8 [2] : vector<2x8x8xf32> to vector<2x8xf32>
    %24 = vector.shape_cast %23 : vector<2x8xf32> to vector<2x8x1xf32>
    %25 = tpu.reciprocal %24 : vector<2x8x1xf32> -> vector<2x8x1xf32>
    %cst_9 = arith.constant dense<0.000000e+00> : vector<2x8x8xf32>
    %26 = tpu.matmul %22, %16, %cst_9 {dimension_numbers = #tpu.dot_dimension_numbers<[2], [1], [1], [2], [0, 0, 0, 1, 1, 2], [0], [0]>} : vector<2x8x8xf32>, vector<2x8x8xf32>, vector<2x8x8xf32> -> vector<2x8x8xf32>
    %27 = vector.broadcast %25 : vector<2x8x1xf32> to vector<2x8x8xf32>
    %28 = arith.mulf %26, %27 : vector<2x8x8xf32>
    %29 = vector.shape_cast %28 : vector<2x8x8xf32> to vector<16x8xf32>
    %30 = vector.extract_strided_slice %8 {offsets = [0, 8], sizes = [16, 8], strides = [1, 1]} : vector<16x32xf32> to vector<16x8xf32>
    %31 = vector.shape_cast %30 : vector<16x8xf32> to vector<2x8x8xf32>
    %32 = vector.extract_strided_slice %9 {offsets = [0, 8], sizes = [16, 8], strides = [1, 1]} : vector<16x32xf32> to vector<16x8xf32>
    %33 = vector.shape_cast %32 : vector<16x8xf32> to vector<2x8x8xf32>
    %34 = vector.extract_strided_slice %10 {offsets = [0, 8], sizes = [16, 8], strides = [1, 1]} : vector<16x32xf32> to vector<16x8xf32>
    %35 = vector.shape_cast %34 : vector<16x8xf32> to vector<2x8x8xf32>
    %cst_10 = arith.constant dense<0.000000e+00> : vector<2x8x8xf32>
    %36 = tpu.matmul %31, %33, %cst_10 {dimension_numbers = #tpu.dot_dimension_numbers<[2], [2], [1], [1], [0, 0, 0, 1, 1, 1], [0], [0]>} : vector<2x8x8xf32>, vector<2x8x8xf32>, vector<2x8x8xf32> -> vector<2x8x8xf32>
    %cst_11 = arith.constant dense<0xFF800000> : vector<2x8xf32>
    %37 = vector.multi_reduction <maximumf>, %36, %cst_11 [2] : vector<2x8x8xf32> to vector<2x8xf32>
    %38 = vector.shape_cast %37 : vector<2x8xf32> to vector<2x8x1xf32>
    %39 = vector.broadcast %38 : vector<2x8x1xf32> to vector<2x8x8xf32>
    %40 = arith.subf %36, %39 : vector<2x8x8xf32>
    %41 = math.exp %40 : vector<2x8x8xf32>
    %cst_12 = arith.constant dense<0.000000e+00> : vector<2x8xf32>
    %42 = vector.multi_reduction <add>, %41, %cst_12 [2] : vector<2x8x8xf32> to vector<2x8xf32>
    %43 = vector.shape_cast %42 : vector<2x8xf32> to vector<2x8x1xf32>
    %44 = tpu.reciprocal %43 : vector<2x8x1xf32> -> vector<2x8x1xf32>
    %cst_13 = arith.constant dense<0.000000e+00> : vector<2x8x8xf32>
    %45 = tpu.matmul %41, %35, %cst_13 {dimension_numbers = #tpu.dot_dimension_numbers<[2], [1], [1], [2], [0, 0, 0, 1, 1, 2], [0], [0]>} : vector<2x8x8xf32>, vector<2x8x8xf32>, vector<2x8x8xf32> -> vector<2x8x8xf32>
    %46 = vector.broadcast %44 : vector<2x8x1xf32> to vector<2x8x8xf32>
    %47 = arith.mulf %45, %46 : vector<2x8x8xf32>
    %48 = vector.shape_cast %47 : vector<2x8x8xf32> to vector<16x8xf32>
    %49 = vector.extract_strided_slice %8 {offsets = [0, 16], sizes = [16, 8], strides = [1, 1]} : vector<16x32xf32> to vector<16x8xf32>
    %50 = vector.shape_cast %49 : vector<16x8xf32> to vector<2x8x8xf32>
    %51 = vector.extract_strided_slice %9 {offsets = [0, 16], sizes = [16, 8], strides = [1, 1]} : vector<16x32xf32> to vector<16x8xf32>
    %52 = vector.shape_cast %51 : vector<16x8xf32> to vector<2x8x8xf32>
    %53 = vector.extract_strided_slice %10 {offsets = [0, 16], sizes = [16, 8], strides = [1, 1]} : vector<16x32xf32> to vector<16x8xf32>
    %54 = vector.shape_cast %53 : vector<16x8xf32> to vector<2x8x8xf32>
    %cst_14 = arith.constant dense<0.000000e+00> : vector<2x8x8xf32>
    %55 = tpu.matmul %50, %52, %cst_14 {dimension_numbers = #tpu.dot_dimension_numbers<[2], [2], [1], [1], [0, 0, 0, 1, 1, 1], [0], [0]>} : vector<2x8x8xf32>, vector<2x8x8xf32>, vector<2x8x8xf32> -> vector<2x8x8xf32>
    %cst_15 = arith.constant dense<0xFF800000> : vector<2x8xf32>
    %56 = vector.multi_reduction <maximumf>, %55, %cst_15 [2] : vector<2x8x8xf32> to vector<2x8xf32>
    %57 = vector.shape_cast %56 : vector<2x8xf32> to vector<2x8x1xf32>
    %58 = vector.broadcast %57 : vector<2x8x1xf32> to vector<2x8x8xf32>
    %59 = arith.subf %55, %58 : vector<2x8x8xf32>
    %60 = math.exp %59 : vector<2x8x8xf32>
    %cst_16 = arith.constant dense<0.000000e+00> : vector<2x8xf32>
    %61 = vector.multi_reduction <add>, %60, %cst_16 [2] : vector<2x8x8xf32> to vector<2x8xf32>
    %62 = vector.shape_cast %61 : vector<2x8xf32> to vector<2x8x1xf32>
    %63 = tpu.reciprocal %62 : vector<2x8x1xf32> -> vector<2x8x1xf32>
    %cst_17 = arith.constant dense<0.000000e+00> : vector<2x8x8xf32>
    %64 = tpu.matmul %60, %54, %cst_17 {dimension_numbers = #tpu.dot_dimension_numbers<[2], [1], [1], [2], [0, 0, 0, 1, 1, 2], [0], [0]>} : vector<2x8x8xf32>, vector<2x8x8xf32>, vector<2x8x8xf32> -> vector<2x8x8xf32>
    %65 = vector.broadcast %63 : vector<2x8x1xf32> to vector<2x8x8xf32>
    %66 = arith.mulf %64, %65 : vector<2x8x8xf32>
    %67 = vector.shape_cast %66 : vector<2x8x8xf32> to vector<16x8xf32>
    %68 = vector.extract_strided_slice %8 {offsets = [0, 24], sizes = [16, 8], strides = [1, 1]} : vector<16x32xf32> to vector<16x8xf32>
    %69 = vector.shape_cast %68 : vector<16x8xf32> to vector<2x8x8xf32>
    %70 = vector.extract_strided_slice %9 {offsets = [0, 24], sizes = [16, 8], strides = [1, 1]} : vector<16x32xf32> to vector<16x8xf32>
    %71 = vector.shape_cast %70 : vector<16x8xf32> to vector<2x8x8xf32>
    %72 = vector.extract_strided_slice %10 {offsets = [0, 24], sizes = [16, 8], strides = [1, 1]} : vector<16x32xf32> to vector<16x8xf32>
    %73 = vector.shape_cast %72 : vector<16x8xf32> to vector<2x8x8xf32>
    %cst_18 = arith.constant dense<0.000000e+00> : vector<2x8x8xf32>
    %74 = tpu.matmul %69, %71, %cst_18 {dimension_numbers = #tpu.dot_dimension_numbers<[2], [2], [1], [1], [0, 0, 0, 1, 1, 1], [0], [0]>} : vector<2x8x8xf32>, vector<2x8x8xf32>, vector<2x8x8xf32> -> vector<2x8x8xf32>
    %cst_19 = arith.constant dense<0xFF800000> : vector<2x8xf32>
    %75 = vector.multi_reduction <maximumf>, %74, %cst_19 [2] : vector<2x8x8xf32> to vector<2x8xf32>
    %76 = vector.shape_cast %75 : vector<2x8xf32> to vector<2x8x1xf32>
    %77 = vector.broadcast %76 : vector<2x8x1xf32> to vector<2x8x8xf32>
    %78 = arith.subf %74, %77 : vector<2x8x8xf32>
    %79 = math.exp %78 : vector<2x8x8xf32>
    %cst_20 = arith.constant dense<0.000000e+00> : vector<2x8xf32>
    %80 = vector.multi_reduction <add>, %79, %cst_20 [2] : vector<2x8x8xf32> to vector<2x8xf32>
    %81 = vector.shape_cast %80 : vector<2x8xf32> to vector<2x8x1xf32>
    %82 = tpu.reciprocal %81 : vector<2x8x1xf32> -> vector<2x8x1xf32>
    %cst_21 = arith.constant dense<0.000000e+00> : vector<2x8x8xf32>
    %83 = tpu.matmul %79, %73, %cst_21 {dimension_numbers = #tpu.dot_dimension_numbers<[2], [1], [1], [2], [0, 0, 0, 1, 1, 2], [0], [0]>} : vector<2x8x8xf32>, vector<2x8x8xf32>, vector<2x8x8xf32> -> vector<2x8x8xf32>
    %84 = vector.broadcast %82 : vector<2x8x1xf32> to vector<2x8x8xf32>
    %85 = arith.mulf %83, %84 : vector<2x8x8xf32>
    %86 = vector.shape_cast %85 : vector<2x8x8xf32> to vector<16x8xf32>
    %87 = tpu.concatenate %29, %48, %67, %86 in 1 : vector<16x8xf32>, vector<16x8xf32>, vector<16x8xf32>, vector<16x8xf32> -> vector<16x32xf32>
    %c0_22 = arith.constant 0 : index
    %c0_23 = arith.constant 0 : index
    %88 = vector.load %arg3[%c0_22, %c0_23] : memref<16x32xf32, #tpu.memory_space<vmem>>, vector<16x32xf32>
    tpu.vector_store %arg3[%c0_22, %c0_23], %87 {strides = array<i32>} : memref<16x32xf32, #tpu.memory_space<vmem>>, vector<16x32xf32>,
    return
  }
}

</mosaic_0001>

<llo_original>
// kernel: tpu_custom_call.1
$region0: #{tpu_custom_call.1}
  #allocation0 [shape = 'u32[]', space=smem, size = 0x4, offset = 0x4, fixed_abs, tag = 'smem constant byte address 0x4 - core index']
  #allocation1 [shape = 'u32[144,128]{1,0:T(1,128)}', space=vmem, size = 0x12000, scoped, tag = 'internal scratch']
  %s0 = inlined_call_operand.hbm [shape: f32[16,32], index: 0, kind: input, shape index: {}]
  %s1 = inlined_call_operand.hbm [shape: f32[32,96], index: 1, kind: input, shape index: {}]
  %s2 = inlined_call_operand.vmem [shape: f32[1,96], index: 2, kind: input, shape index: {}]
  %s3 = inlined_call_operand.hbm [shape: f32[16,32], index: 3, kind: output, shape index: {}]
  %s4 = sld [smem:[#allocation0]]
  $region30: #{tpu_custom_call.1} parent=0
    _
  %s6 = ssub.s32 1, %s4
  %s7 = scalar_select 0, %s6, %s4
  $region1: #{tpu_custom_call.1} parent=0
    #allocation2 [shape = 'u8[8192]{0}', space=vmem, size = 0x2000, scoped, tag = 'input window, operand 0, single buffered']
    #allocation3 [shape = 's32[1]{0}', space=sflag, size = 0x4, scoped, tag = 'scoped memory for tpu_custom_call.1']
    #allocation4 [shape = 's32[1]{0}', space=sflag, size = 0x4, scoped, tag = 'scoped memory for tpu_custom_call.1']
    #allocation5 [shape = 'u8[16384]{0}', space=vmem, size = 0x4000, scoped, tag = 'input window, operand 1, single buffered']
    #allocation6 [shape = 's32[1]{0}', space=sflag, size = 0x4, scoped, tag = 'scoped memory for tpu_custom_call.1']
    #allocation7 [shape = 'u8[8192]{0}', space=vmem, size = 0x2000, scoped, tag = 'output window, operand 0, single buffered']
    %8 = vsyncpa [#allocation3], 0
    %9 = vsyncpa [#allocation6], 0
    %10 = vsyncpa [#allocation4], 0
    // Predicated region
    $region2: #{tpu_custom_call.1} parent=1 // pred_check
      _
    $region3: #{tpu_custom_call.1} parent=1 // pred_check_branch
      %12 = sbr.rel (0) target = $region5
    $region4: #{tpu_custom_call.1} parent=1 // pred_region
      %s14 = ssub.s32 256, 256
      %15 = vsyncadd [#allocation3], %s14
      %s16 = sshll.u32 [#allocation2], 4
      %s17 = int_to_ptr.vmem [resolvable:$true] %s16
      %22 = dma.hbm_to_vmem [thread:$0]  %s0, 256, %s17, [#allocation3], 128, 128, 8
    $region5: #{tpu_custom_call.1} parent=1 // pred_fallthru
      _
    // Predicated region
    $region6: #{tpu_custom_call.1} parent=1 // pred_check
      _
    $region7: #{tpu_custom_call.1} parent=1 // pred_check_branch
      %24 = sbr.rel (0) target = $region9
    $region8: #{tpu_custom_call.1} parent=1 // pred_region
      %s26 = ssub.s32 512, 512
      %27 = vsyncadd [#allocation6], %s26
      %s28 = sshll.u32 [#allocation5], 4
      %s29 = int_to_ptr.vmem [resolvable:$true] %s28
      %34 = dma.hbm_to_vmem [thread:$0]  %s1, 512, %s29, [#allocation6], 128, 128, 8
    $region9: #{tpu_custom_call.1} parent=1 // pred_fallthru
      _
    // Predicated region
    $region10: #{tpu_custom_call.1} parent=1 // pred_check
      _
    $region11: #{tpu_custom_call.1} parent=1 // pred_check_branch
      %36 = sbr.rel (0) target = $region13
    $region12: #{tpu_custom_call.1} parent=1 // pred_region
      _
    $region13: #{tpu_custom_call.1} parent=1 // pred_fallthru
      _
    // Predicated region
    $region14: #{tpu_custom_call.1} parent=1 // pred_check
      _
    $region15: #{tpu_custom_call.1} parent=1 // pred_check_branch
      %38 = sbr.rel (0) target = $region17
    $region16: #{tpu_custom_call.1} parent=1 // pred_region
      %39 = dma.done [#allocation3], 256
    $region17: #{tpu_custom_call.1} parent=1 // pred_fallthru
      _
    // Predicated region
    $region18: #{tpu_custom_call.1} parent=1 // pred_check
      _
    $region19: #{tpu_custom_call.1} parent=1 // pred_check_branch
      %41 = sbr.rel (0) target = $region21
    $region20: #{tpu_custom_call.1} parent=1 // pred_region
      %42 = dma.done [#allocation6], 512
    $region21: #{tpu_custom_call.1} parent=1 // pred_fallthru
      _
    %v43 = vld [vmem:[#allocation2] sm:$0xff]
    %v44 = vld [vmem:[#allocation2 + $0x8] sm:$0xff]
    %v45 = vld [vmem:[#allocation5] sm:$0xff]
    %v46 = vld [vmem:[#allocation5 + $0x8] sm:$0xff]
    %v47 = vld [vmem:[#allocation5 + $0x10] sm:$0xff]
    %v48 = vld [vmem:[#allocation5 + $0x18] sm:$0xff]
    %v49 = vld [vmem:[%s2] sm:$0x1]
    %v51 = vlaneseq
    %v52 = vshrl.u32 %v51, 7
    %v53 = vsub.s32 0, %v52
    %v54 = vrot.slane %v49, %v53
    %vm56 = vcmask 261120
    %v58 = vsel %vm56, %v43, 0
    %v61 = vsel %vm56, %v44, 0
    %63 = vmatprep.subr.mxu0 0.0
    %64 = vmatpush1.msra.mxu0 0.0
    %65 = vmatprep.subr.mxu0 0.0
    %66 = vmatpush1.msra.mxu0 0.0
    %67 = vmatprep.subr.mxu0 0.0
    %68 = vmatpush1.msra.mxu0 0.0
    %69 = vmatprep.subr.mxu0 0.0
    %70 = vmatpush1.msra.mxu0 0.0
    %71 = vmatprep.subr.mxu0 0.0
    %72 = vmatpush1.msra.mxu0 0.0
    %73 = vmatprep.subr.mxu0 0.0
    %74 = vmatpush1.msra.mxu0 0.0
    %75 = vmatprep.subr.mxu0 0.0
    %76 = vmatpush1.msra.mxu0 0.0
    %77 = vmatprep.subr.mxu0 0.0
    %78 = vmatpush1.msra.mxu0 0.0
    %79 = vmatprep.subr.mxu0 0.0
    %80 = vmatpush1.msra.mxu0 0.0
    %81 = vmatprep.subr.mxu0 0.0
    %82 = vmatpush1.msra.mxu0 0.0
    %83 = vmatprep.subr.mxu0 0.0
    %84 = vmatpush1.msra.mxu0 0.0
    %85 = vmatprep.subr.mxu0 0.0
    %86 = vmatpush1.msra.mxu0 0.0
    %87 = vmatprep.subr.mxu0 0.0
    %88 = vmatpush1.msra.mxu0 %v48
    %89 = vmatprep.subr.mxu0 0.0
    %90 = vmatpush1.msra.mxu0 %v47
    %91 = vmatprep.subr.mxu0 0.0
    %92 = vmatpush1.msra.mxu0 %v46
    %93 = vmatprep.subr.mxu0 0.0
    %94 = vmatpush1.msra.mxu0 %v45
    %95 = vmatprep.subr.mxu0 0.0
    %96 = vmatpush2.msra.mxu0 0.0
    %97 = vmatprep.subr.mxu0 0.0
    %98 = vmatpush2.msra.mxu0 0.0
    %99 = vmatprep.subr.mxu0 0.0
    %100 = vmatpush2.msra.mxu0 0.0
    %101 = vmatprep.subr.mxu0 0.0
    %102 = vmatpush2.msra.mxu0 0.0
    %103 = vmatprep.subr.mxu0 0.0
    %104 = vmatpush2.msra.mxu0 0.0
    %105 = vmatprep.subr.mxu0 0.0
    %106 = vmatpush2.msra.mxu0 0.0
    %107 = vmatprep.subr.mxu0 0.0
    %108 = vmatpush2.msra.mxu0 0.0
    %109 = vmatprep.subr.mxu0 0.0
    %110 = vmatpush2.msra.mxu0 0.0
    %111 = vmatprep.subr.mxu0 0.0
    %112 = vmatpush2.msra.mxu0 0.0
    %113 = vmatprep.subr.mxu0 0.0
    %114 = vmatpush2.msra.mxu0 0.0
    %115 = vmatprep.subr.mxu0 0.0
    %116 = vmatpush2.msra.mxu0 0.0
    %117 = vmatprep.subr.mxu0 0.0
    %118 = vmatpush2.msra.mxu0 0.0
    %119 = vmatprep.subr.mxu0 0.0
    %120 = vmatpush2.msra.mxu0 0.0
    %121 = vmatprep.subr.mxu0 0.0
    %122 = vmatpush2.msra.mxu0 0.0
    %123 = vmatprep.subr.mxu0 0.0
    %124 = vmatpush2.msra.mxu0 0.0
    %125 = vmatprep.subr.mxu0 0.0
    %126 = vmatpush2.msra.mxu0 0.0
    %127 = vmatprep.mubr.f32.mxu0 0.0
    %128 = vmatmul.mubr.f32.gmra.mxu0 %v58
    %v129 = vpop.f32.mrf.mxu0
    %v130 = vadd.f32 %v54, %v129
    %v131 = vpop.f32.mrf.mxu0
    %132 = vmatprep.mubr.f32.mxu0 0.0
    %133 = vmatmul.mubr.f32.gmra.mxu0 %v61
    %v134 = vpop.f32.mrf.mxu0
    %v135 = vadd.f32 %v54, %v134
    %v136 = vpop.f32.mrf.mxu0
    %137 = vdwg.mxu0
    %v138 = vmul.f32 %v130, 0.35355338
    %v139 = vmul.f32 %v135, 0.35355338
    %141 = vrot.lane.b32.xlu0 %v130, 96
    %v142 = vpop.permute.xlu0 %141
    %vm143 = vcmask 64512
    %v145 = vsel %vm143, %v138, 0
    %v147 = vsel %vm143, %v142, 0
    %149 = vmatprep.subr.mxu0 0.0
    %150 = vmatpush1.xpose.msra.mxu0 0.0
    %151 = vmatprep.subr.mxu0 0.0
    %152 = vmatpush1.xpose.msra.mxu0 0.0
    %153 = vmatprep.subr.mxu0 0.0
    %154 = vmatpush1.xpose.msra.mxu0 0.0
    %155 = vmatprep.subr.mxu0 0.0
    %156 = vmatpush1.xpose.msra.mxu0 0.0
    %157 = vmatprep.subr.mxu0 0.0
    %158 = vmatpush1.xpose.msra.mxu0 0.0
    %159 = vmatprep.subr.mxu0 0.0
    %160 = vmatpush1.xpose.msra.mxu0 0.0
    %161 = vmatprep.subr.mxu0 0.0
    %162 = vmatpush1.xpose.msra.mxu0 0.0
    %163 = vmatprep.subr.mxu0 0.0
    %164 = vmatpush1.xpose.msra.mxu0 0.0
    %165 = vmatprep.subr.mxu0 0.0
    %166 = vmatpush1.xpose.msra.mxu0 0.0
    %167 = vmatprep.subr.mxu0 0.0
    %168 = vmatpush1.xpose.msra.mxu0 0.0
    %169 = vmatprep.subr.mxu0 0.0
    %170 = vmatpush1.xpose.msra.mxu0 0.0
    %171 = vmatprep.subr.mxu0 0.0
    %172 = vmatpush1.xpose.msra.mxu0 0.0
    %173 = vmatprep.subr.mxu0 0.0
    %174 = vmatpush1.xpose.msra.mxu0 0.0
    %175 = vmatprep.subr.mxu0 0.0
    %176 = vmatpush1.xpose.msra.mxu0 0.0
    %177 = vmatprep.subr.mxu0 0.0
    %178 = vmatpush1.xpose.msra.mxu0 0.0
    %179 = vmatprep.subr.mxu0 0.0
    %180 = vmatpush1.xpose.msra.mxu0 %v147
    %181 = vmatprep.subr.mxu0 0.0
    %182 = vmatpush2.xpose.msra.mxu0 0.0
    %183 = vmatprep.subr.mxu0 0.0
    %184 = vmatpush2.xpose.msra.mxu0 0.0
    %185 = vmatprep.subr.mxu0 0.0
    %186 = vmatpush2.xpose.msra.mxu0 0.0
    %187 = vmatprep.subr.mxu0 0.0
    %188 = vmatpush2.xpose.msra.mxu0 0.0
    %189 = vmatprep.subr.mxu0 0.0
    %190 = vmatpush2.xpose.msra.mxu0 0.0
    %191 = vmatprep.subr.mxu0 0.0
    %192 = vmatpush2.xpose.msra.mxu0 0.0
    %193 = vmatprep.subr.mxu0 0.0
    %194 = vmatpush2.xpose.msra.mxu0 0.0
    %195 = vmatprep.subr.mxu0 0.0
    %196 = vmatpush2.xpose.msra.mxu0 0.0
    %197 = vmatprep.subr.mxu0 0.0
    %198 = vmatpush2.xpose.msra.mxu0 0.0
    %199 = vmatprep.subr.mxu0 0.0
    %200 = vmatpush2.xpose.msra.mxu0 0.0
    %201 = vmatprep.subr.mxu0 0.0
    %202 = vmatpush2.xpose.msra.mxu0 0.0
    %203 = vmatprep.subr.mxu0 0.0
    %204 = vmatpush2.xpose.msra.mxu0 0.0
    %205 = vmatprep.subr.mxu0 0.0
    %206 = vmatpush2.xpose.msra.mxu0 0.0
    %207 = vmatprep.subr.mxu0 0.0
    %208 = vmatpush2.xpose.msra.mxu0 0.0
    %209 = vmatprep.subr.mxu0 0.0
    %210 = vmatpush2.xpose.msra.mxu0 0.0
    %211 = vmatprep.subr.mxu0 0.0
    %212 = vmatpush2.xpose.msra.mxu0 0.0
    %213 = vmatprep.mubr.f32.mxu0 0.0
    %214 = vmatmul.mubr.f32.gmra.mxu0 %v145
    %v215 = vpop.f32.mrf.mxu0
    %v216 = vadd.f32 0.0, %v215
    %v217 = vpop.f32.mrf.mxu0
    %218 = vdwg.mxu0
    %220 = vrot.lane.b32.xlu0 %v135, 96
    %v221 = vpop.permute.xlu0 %220
    %v223 = vsel %vm143, %v139, 0
    %v225 = vsel %vm143, %v221, 0
    %227 = vmatprep.subr.mxu0 0.0
    %228 = vmatpush1.xpose.msra.mxu0 0.0
    %229 = vmatprep.subr.mxu0 0.0
    %230 = vmatpush1.xpose.msra.mxu0 0.0
    %231 = vmatprep.subr.mxu0 0.0
    %232 = vmatpush1.xpose.msra.mxu0 0.0
    %233 = vmatprep.subr.mxu0 0.0
    %234 = vmatpush1.xpose.msra.mxu0 0.0
    %235 = vmatprep.subr.mxu0 0.0
    %236 = vmatpush1.xpose.msra.mxu0 0.0
    %237 = vmatprep.subr.mxu0 0.0
    %238 = vmatpush1.xpose.msra.mxu0 0.0
    %239 = vmatprep.subr.mxu0 0.0
    %240 = vmatpush1.xpose.msra.mxu0 0.0
    %241 = vmatprep.subr.mxu0 0.0
    %242 = vmatpush1.xpose.msra.mxu0 0.0
    %243 = vmatprep.subr.mxu0 0.0
    %244 = vmatpush1.xpose.msra.mxu0 0.0
    %245 = vmatprep.subr.mxu0 0.0
    %246 = vmatpush1.xpose.msra.mxu0 0.0
    %247 = vmatprep.subr.mxu0 0.0
    %248 = vmatpush1.xpose.msra.mxu0 0.0
    %249 = vmatprep.subr.mxu0 0.0
    %250 = vmatpush1.xpose.msra.mxu0 0.0
    %251 = vmatprep.subr.mxu0 0.0
    %252 = vmatpush1.xpose.msra.mxu0 0.0
    %253 = vmatprep.subr.mxu0 0.0
    %254 = vmatpush1.xpose.msra.mxu0 0.0
    %255 = vmatprep.subr.mxu0 0.0
    %256 = vmatpush1.xpose.msra.mxu0 0.0
    %257 = vmatprep.subr.mxu0 0.0
    %258 = vmatpush1.xpose.msra.mxu0 %v225
    %259 = vmatprep.subr.mxu0 0.0
    %260 = vmatpush2.xpose.msra.mxu0 0.0
    %261 = vmatprep.subr.mxu0 0.0
    %262 = vmatpush2.xpose.msra.mxu0 0.0
    %263 = vmatprep.subr.mxu0 0.0
    %264 = vmatpush2.xpose.msra.mxu0 0.0
    %265 = vmatprep.subr.mxu0 0.0
    %266 = vmatpush2.xpose.msra.mxu0 0.0
    %267 = vmatprep.subr.mxu0 0.0
    %268 = vmatpush2.xpose.msra.mxu0 0.0
    %269 = vmatprep.subr.mxu0 0.0
    %270 = vmatpush2.xpose.msra.mxu0 0.0
    %271 = vmatprep.subr.mxu0 0.0
    %272 = vmatpush2.xpose.msra.mxu0 0.0
    %273 = vmatprep.subr.mxu0 0.0
    %274 = vmatpush2.xpose.msra.mxu0 0.0
    %275 = vmatprep.subr.mxu0 0.0
    %276 = vmatpush2.xpose.msra.mxu0 0.0
    %277 = vmatprep.subr.mxu0 0.0
    %278 = vmatpush2.xpose.msra.mxu0 0.0
    %279 = vmatprep.subr.mxu0 0.0
    %280 = vmatpush2.xpose.msra.mxu0 0.0
    %281 = vmatprep.subr.mxu0 0.0
    %282 = vmatpush2.xpose.msra.mxu0 0.0
    %283 = vmatprep.subr.mxu0 0.0
    %284 = vmatpush2.xpose.msra.mxu0 0.0
    %285 = vmatprep.subr.mxu0 0.0
    %286 = vmatpush2.xpose.msra.mxu0 0.0
    %287 = vmatprep.subr.mxu0 0.0
    %288 = vmatpush2.xpose.msra.mxu0 0.0
    %289 = vmatprep.subr.mxu0 0.0
    %290 = vmatpush2.xpose.msra.mxu0 0.0
    %291 = vmatprep.mubr.f32.mxu0 0.0
    %292 = vmatmul.mubr.f32.gmra.mxu0 %v223
    %v293 = vpop.f32.mrf.mxu0
    %v294 = vadd.f32 0.0, %v293
    %v295 = vpop.f32.mrf.mxu0
    %296 = vdwg.mxu0
    %v297 = vsel %vm143, %v216, -inf
    %298 = vmax.xlane.f32.xlu0 %v297
    %v299 = vpop.xlane.xlu0 %298
    %v300 = vsel %vm143, %v294, -inf
    %301 = vmax.xlane.f32.xlu0 %v300
    %v302 = vpop.xlane.xlu0 %301
    %v303 = vsub.f32 %v216, %v299
    %v304 = vsub.f32 %v294, %v302
    %v305 = vmul.f32 %v303, 1.442695
    %v306 = vpow.pop %v305
    %v307 = vmul.f32 %v304, 1.442695
    %v308 = vpow.pop %v307
    %v309 = vsel %vm143, %v306, 0.0
    %310 = vadd.xlane.f32.xlu0 %v309
    %v311 = vpop.xlane.xlu0 %310
    %v312 = vsel %vm143, %v308, 0.0
    %313 = vadd.xlane.f32.xlu0 %v312
    %v314 = vpop.xlane.xlu0 %313
    %v315 = vrcp.pop %v311
    %v316 = vrcp.pop %v314
    %317 = vrot.lane.b32.xlu0 %v130, 64
    %v318 = vpop.permute.xlu0 %317
    %v321 = vsel %vm143, %v306, 0
    %323 = vmatprep.subr.mxu0 0.0
    %324 = vmatpush1.msra.mxu0 0.0
    %325 = vmatprep.subr.mxu0 0.0
    %326 = vmatpush1.msra.mxu0 0.0
    %327 = vmatprep.subr.mxu0 0.0
    %328 = vmatpush1.msra.mxu0 0.0
    %329 = vmatprep.subr.mxu0 0.0
    %330 = vmatpush1.msra.mxu0 0.0
    %331 = vmatprep.subr.mxu0 0.0
    %332 = vmatpush1.msra.mxu0 0.0
    %333 = vmatprep.subr.mxu0 0.0
    %334 = vmatpush1.msra.mxu0 0.0
    %335 = vmatprep.subr.mxu0 0.0
    %336 = vmatpush1.msra.mxu0 0.0
    %337 = vmatprep.subr.mxu0 0.0
    %338 = vmatpush1.msra.mxu0 0.0
    %339 = vmatprep.subr.mxu0 0.0
    %340 = vmatpush1.msra.mxu0 0.0
    %341 = vmatprep.subr.mxu0 0.0
    %342 = vmatpush1.msra.mxu0 0.0
    %343 = vmatprep.subr.mxu0 0.0
    %344 = vmatpush1.msra.mxu0 0.0
    %345 = vmatprep.subr.mxu0 0.0
    %346 = vmatpush1.msra.mxu0 0.0
    %347 = vmatprep.subr.mxu0 0.0
    %348 = vmatpush1.msra.mxu0 0.0
    %349 = vmatprep.subr.mxu0 0.0
    %350 = vmatpush1.msra.mxu0 0.0
    %351 = vmatprep.subr.mxu0 0.0
    %352 = vmatpush1.msra.mxu0 0.0
    %353 = vmatprep.subr.mxu0 0.0
    %354 = vmatpush1.msra.mxu0 %v318
    %355 = vmatprep.subr.mxu0 0.0
    %356 = vmatpush2.msra.mxu0 0.0
    %357 = vmatprep.subr.mxu0 0.0
    %358 = vmatpush2.msra.mxu0 0.0
    %359 = vmatprep.subr.mxu0 0.0
    %360 = vmatpush2.msra.mxu0 0.0
    %361 = vmatprep.subr.mxu0 0.0
    %362 = vmatpush2.msra.mxu0 0.0
    %363 = vmatprep.subr.mxu0 0.0
    %364 = vmatpush2.msra.mxu0 0.0
    %365 = vmatprep.subr.mxu0 0.0
    %366 = vmatpush2.msra.mxu0 0.0
    %367 = vmatprep.subr.mxu0 0.0
    %368 = vmatpush2.msra.mxu0 0.0
    %369 = vmatprep.subr.mxu0 0.0
    %370 = vmatpush2.msra.mxu0 0.0
    %371 = vmatprep.subr.mxu0 0.0
    %372 = vmatpush2.msra.mxu0 0.0
    %373 = vmatprep.subr.mxu0 0.0
    %374 = vmatpush2.msra.mxu0 0.0
    %375 = vmatprep.subr.mxu0 0.0
    %376 = vmatpush2.msra.mxu0 0.0
    %377 = vmatprep.subr.mxu0 0.0
    %378 = vmatpush2.msra.mxu0 0.0
    %379 = vmatprep.subr.mxu0 0.0
    %380 = vmatpush2.msra.mxu0 0.0
    %381 = vmatprep.subr.mxu0 0.0
    %382 = vmatpush2.msra.mxu0 0.0
    %383 = vmatprep.subr.mxu0 0.0
    %384 = vmatpush2.msra.mxu0 0.0
    %385 = vmatprep.subr.mxu0 0.0
    %386 = vmatpush2.msra.mxu0 0.0
    %387 = vmatprep.mubr.f32.mxu0 0.0
    %388 = vmatmul.mubr.f32.gmra.mxu0 %v321
    %v389 = vpop.f32.mrf.mxu0
    %v390 = vadd.f32 0.0, %v389
    %v391 = vpop.f32.mrf.mxu0
    %392 = vdwg.mxu0
    %393 = vrot.lane.b32.xlu0 %v135, 64
    %v394 = vpop.permute.xlu0 %393
    %v397 = vsel %vm143, %v308, 0
    %399 = vmatprep.subr.mxu0 0.0
    %400 = vmatpush1.msra.mxu0 0.0
    %401 = vmatprep.subr.mxu0 0.0
    %402 = vmatpush1.msra.mxu0 0.0
    %403 = vmatprep.subr.mxu0 0.0
    %404 = vmatpush1.msra.mxu0 0.0
    %405 = vmatprep.subr.mxu0 0.0
    %406 = vmatpush1.msra.mxu0 0.0
    %407 = vmatprep.subr.mxu0 0.0
    %408 = vmatpush1.msra.mxu0 0.0
    %409 = vmatprep.subr.mxu0 0.0
    %410 = vmatpush1.msra.mxu0 0.0
    %411 = vmatprep.subr.mxu0 0.0
    %412 = vmatpush1.msra.mxu0 0.0
    %413 = vmatprep.subr.mxu0 0.0
    %414 = vmatpush1.msra.mxu0 0.0
    %415 = vmatprep.subr.mxu0 0.0
    %416 = vmatpush1.msra.mxu0 0.0
    %417 = vmatprep.subr.mxu0 0.0
    %418 = vmatpush1.msra.mxu0 0.0
    %419 = vmatprep.subr.mxu0 0.0
    %420 = vmatpush1.msra.mxu0 0.0
    %421 = vmatprep.subr.mxu0 0.0
    %422 = vmatpush1.msra.mxu0 0.0
    %423 = vmatprep.subr.mxu0 0.0
    %424 = vmatpush1.msra.mxu0 0.0
    %425 = vmatprep.subr.mxu0 0.0
    %426 = vmatpush1.msra.mxu0 0.0
    %427 = vmatprep.subr.mxu0 0.0
    %428 = vmatpush1.msra.mxu0 0.0
    %429 = vmatprep.subr.mxu0 0.0
    %430 = vmatpush1.msra.mxu0 %v394
    %431 = vmatprep.subr.mxu0 0.0
    %432 = vmatpush2.msra.mxu0 0.0
    %433 = vmatprep.subr.mxu0 0.0
    %434 = vmatpush2.msra.mxu0 0.0
    %435 = vmatprep.subr.mxu0 0.0
    %436 = vmatpush2.msra.mxu0 0.0
    %437 = vmatprep.subr.mxu0 0.0
    %438 = vmatpush2.msra.mxu0 0.0
    %439 = vmatprep.subr.mxu0 0.0
    %440 = vmatpush2.msra.mxu0 0.0
    %441 = vmatprep.subr.mxu0 0.0
    %442 = vmatpush2.msra.mxu0 0.0
    %443 = vmatprep.subr.mxu0 0.0
    %444 = vmatpush2.msra.mxu0 0.0
    %445 = vmatprep.subr.mxu0 0.0
    %446 = vmatpush2.msra.mxu0 0.0
    %447 = vmatprep.subr.mxu0 0.0
    %448 = vmatpush2.msra.mxu0 0.0
    %449 = vmatprep.subr.mxu0 0.0
    %450 = vmatpush2.msra.mxu0 0.0
    %451 = vmatprep.subr.mxu0 0.0
    %452 = vmatpush2.msra.mxu0 0.0
    %453 = vmatprep.subr.mxu0 0.0
    %454 = vmatpush2.msra.mxu0 0.0
    %455 = vmatprep.subr.mxu0 0.0
    %456 = vmatpush2.msra.mxu0 0.0
    %457 = vmatprep.subr.mxu0 0.0
    %458 = vmatpush2.msra.mxu0 0.0
    %459 = vmatprep.subr.mxu0 0.0
    %460 = vmatpush2.msra.mxu0 0.0
    %461 = vmatprep.subr.mxu0 0.0
    %462 = vmatpush2.msra.mxu0 0.0
    %463 = vmatprep.mubr.f32.mxu0 0.0
    %464 = vmatmul.mubr.f32.gmra.mxu0 %v397
    %v465 = vpop.f32.mrf.mxu0
    %v466 = vadd.f32 0.0, %v465
    %v467 = vpop.f32.mrf.mxu0
    %468 = vdwg.mxu0
    %v469 = vmul.f32 %v390, %v315
    %v470 = vmul.f32 %v466, %v316
    %471 = vrot.lane.b32.xlu0 %v138, 120
    %v472 = vpop.permute.xlu0 %471
    %473 = vrot.lane.b32.xlu0 %v130, 88
    %v474 = vpop.permute.xlu0 %473
    %v475 = vsel %vm143, %v472, 0
    %v477 = vsel %vm143, %v474, 0
    %479 = vmatprep.subr.mxu0 0.0
    %480 = vmatpush1.xpose.msra.mxu0 0.0
    %481 = vmatprep.subr.mxu0 0.0
    %482 = vmatpush1.xpose.msra.mxu0 0.0
    %483 = vmatprep.subr.mxu0 0.0
    %484 = vmatpush1.xpose.msra.mxu0 0.0
    %485 = vmatprep.subr.mxu0 0.0
    %486 = vmatpush1.xpose.msra.mxu0 0.0
    %487 = vmatprep.subr.mxu0 0.0
    %488 = vmatpush1.xpose.msra.mxu0 0.0
    %489 = vmatprep.subr.mxu0 0.0
    %490 = vmatpush1.xpose.msra.mxu0 0.0
    %491 = vmatprep.subr.mxu0 0.0
    %492 = vmatpush1.xpose.msra.mxu0 0.0
    %493 = vmatprep.subr.mxu0 0.0
    %494 = vmatpush1.xpose.msra.mxu0 0.0
    %495 = vmatprep.subr.mxu0 0.0
    %496 = vmatpush1.xpose.msra.mxu0 0.0
    %497 = vmatprep.subr.mxu0 0.0
    %498 = vmatpush1.xpose.msra.mxu0 0.0
    %499 = vmatprep.subr.mxu0 0.0
    %500 = vmatpush1.xpose.msra.mxu0 0.0
    %501 = vmatprep.subr.mxu0 0.0
    %502 = vmatpush1.xpose.msra.mxu0 0.0
    %503 = vmatprep.subr.mxu0 0.0
    %504 = vmatpush1.xpose.msra.mxu0 0.0
    %505 = vmatprep.subr.mxu0 0.0
    %506 = vmatpush1.xpose.msra.mxu0 0.0
    %507 = vmatprep.subr.mxu0 0.0
    %508 = vmatpush1.xpose.msra.mxu0 0.0
    %509 = vmatprep.subr.mxu0 0.0
    %510 = vmatpush1.xpose.msra.mxu0 %v477
    %511 = vmatprep.subr.mxu0 0.0
    %512 = vmatpush2.xpose.msra.mxu0 0.0
    %513 = vmatprep.subr.mxu0 0.0
    %514 = vmatpush2.xpose.msra.mxu0 0.0
    %515 = vmatprep.subr.mxu0 0.0
    %516 = vmatpush2.xpose.msra.mxu0 0.0
    %517 = vmatprep.subr.mxu0 0.0
    %518 = vmatpush2.xpose.msra.mxu0 0.0
    %519 = vmatprep.subr.mxu0 0.0
    %520 = vmatpush2.xpose.msra.mxu0 0.0
    %521 = vmatprep.subr.mxu0 0.0
    %522 = vmatpush2.xpose.msra.mxu0 0.0
    %523 = vmatprep.subr.mxu0 0.0
    %524 = vmatpush2.xpose.msra.mxu0 0.0
    %525 = vmatprep.subr.mxu0 0.0
    %526 = vmatpush2.xpose.msra.mxu0 0.0
    %527 = vmatprep.subr.mxu0 0.0
    %528 = vmatpush2.xpose.msra.mxu0 0.0
    %529 = vmatprep.subr.mxu0 0.0
    %530 = vmatpush2.xpose.msra.mxu0 0.0
    %531 = vmatprep.subr.mxu0 0.0
    %532 = vmatpush2.xpose.msra.mxu0 0.0
    %533 = vmatprep.subr.mxu0 0.0
    %534 = vmatpush2.xpose.msra.mxu0 0.0
    %535 = vmatprep.subr.mxu0 0.0
    %536 = vmatpush2.xpose.msra.mxu0 0.0
    %537 = vmatprep.subr.mxu0 0.0
    %538 = vmatpush2.xpose.msra.mxu0 0.0
    %539 = vmatprep.subr.mxu0 0.0
    %540 = vmatpush2.xpose.msra.mxu0 0.0
    %541 = vmatprep.subr.mxu0 0.0
    %542 = vmatpush2.xpose.msra.mxu0 0.0
    %543 = vmatprep.mubr.f32.mxu0 0.0
    %544 = vmatmul.mubr.f32.gmra.mxu0 %v475
    %v545 = vpop.f32.mrf.mxu0
    %v546 = vadd.f32 0.0, %v545
    %v547 = vpop.f32.mrf.mxu0
    %548 = vdwg.mxu0
    %549 = vrot.lane.b32.xlu0 %v139, 120
    %v550 = vpop.permute.xlu0 %549
    %551 = vrot.lane.b32.xlu0 %v135, 88
    %v552 = vpop.permute.xlu0 %551
    %v553 = vsel %vm143, %v550, 0
    %v555 = vsel %vm143, %v552, 0
    %557 = vmatprep.subr.mxu0 0.0
    %558 = vmatpush1.xpose.msra.mxu0 0.0
    %559 = vmatprep.subr.mxu0 0.0
    %560 = vmatpush1.xpose.msra.mxu0 0.0
    %561 = vmatprep.subr.mxu0 0.0
    %562 = vmatpush1.xpose.msra.mxu0 0.0
    %563 = vmatprep.subr.mxu0 0.0
    %564 = vmatpush1.xpose.msra.mxu0 0.0
    %565 = vmatprep.subr.mxu0 0.0
    %566 = vmatpush1.xpose.msra.mxu0 0.0
    %567 = vmatprep.subr.mxu0 0.0
    %568 = vmatpush1.xpose.msra.mxu0 0.0
    %569 = vmatprep.subr.mxu0 0.0
    %570 = vmatpush1.xpose.msra.mxu0 0.0
    %571 = vmatprep.subr.mxu0 0.0
    %572 = vmatpush1.xpose.msra.mxu0 0.0
    %573 = vmatprep.subr.mxu0 0.0
    %574 = vmatpush1.xpose.msra.mxu0 0.0
    %575 = vmatprep.subr.mxu0 0.0
    %576 = vmatpush1.xpose.msra.mxu0 0.0
    %577 = vmatprep.subr.mxu0 0.0
    %578 = vmatpush1.xpose.msra.mxu0 0.0
    %579 = vmatprep.subr.mxu0 0.0
    %580 = vmatpush1.xpose.msra.mxu0 0.0
    %581 = vmatprep.subr.mxu0 0.0
    %582 = vmatpush1.xpose.msra.mxu0 0.0
    %583 = vmatprep.subr.mxu0 0.0
    %584 = vmatpush1.xpose.msra.mxu0 0.0
    %585 = vmatprep.subr.mxu0 0.0
    %586 = vmatpush1.xpose.msra.mxu0 0.0
    %587 = vmatprep.subr.mxu0 0.0
    %588 = vmatpush1.xpose.msra.mxu0 %v555
    %589 = vmatprep.subr.mxu0 0.0
    %590 = vmatpush2.xpose.msra.mxu0 0.0
    %591 = vmatprep.subr.mxu0 0.0
    %592 = vmatpush2.xpose.msra.mxu0 0.0
    %593 = vmatprep.subr.mxu0 0.0
    %594 = vmatpush2.xpose.msra.mxu0 0.0
    %595 = vmatprep.subr.mxu0 0.0
    %596 = vmatpush2.xpose.msra.mxu0 0.0
    %597 = vmatprep.subr.mxu0 0.0
    %598 = vmatpush2.xpose.msra.mxu0 0.0
    %599 = vmatprep.subr.mxu0 0.0
    %600 = vmatpush2.xpose.msra.mxu0 0.0
    %601 = vmatprep.subr.mxu0 0.0
    %602 = vmatpush2.xpose.msra.mxu0 0.0
    %603 = vmatprep.subr.mxu0 0.0
    %604 = vmatpush2.xpose.msra.mxu0 0.0
    %605 = vmatprep.subr.mxu0 0.0
    %606 = vmatpush2.xpose.msra.mxu0 0.0
    %607 = vmatprep.subr.mxu0 0.0
    %608 = vmatpush2.xpose.msra.mxu0 0.0
    %609 = vmatprep.subr.mxu0 0.0
    %610 = vmatpush2.xpose.msra.mxu0 0.0
    %611 = vmatprep.subr.mxu0 0.0
    %612 = vmatpush2.xpose.msra.mxu0 0.0
    %613 = vmatprep.subr.mxu0 0.0
    %614 = vmatpush2.xpose.msra.mxu0 0.0
    %615 = vmatprep.subr.mxu0 0.0
    %616 = vmatpush2.xpose.msra.mxu0 0.0
    %617 = vmatprep.subr.mxu0 0.0
    %618 = vmatpush2.xpose.msra.mxu0 0.0
    %619 = vmatprep.subr.mxu0 0.0
    %620 = vmatpush2.xpose.msra.mxu0 0.0
    %621 = vmatprep.mubr.f32.mxu0 0.0
    %622 = vmatmul.mubr.f32.gmra.mxu0 %v553
    %v623 = vpop.f32.mrf.mxu0
    %v624 = vadd.f32 0.0, %v623
    %v625 = vpop.f32.mrf.mxu0
    %626 = vdwg.mxu0
    %v627 = vsel %vm143, %v546, -inf
    %628 = vmax.xlane.f32.xlu0 %v627
    %v629 = vpop.xlane.xlu0 %628
    %v630 = vsel %vm143, %v624, -inf
    %631 = vmax.xlane.f32.xlu0 %v630
    %v632 = vpop.xlane.xlu0 %631
    %v633 = vsub.f32 %v546, %v629
    %v634 = vsub.f32 %v624, %v632
    %v635 = vmul.f32 %v633, 1.442695
    %v636 = vpow.pop %v635
    %v637 = vmul.f32 %v634, 1.442695
    %v638 = vpow.pop %v637
    %v639 = vsel %vm143, %v636, 0.0
    %640 = vadd.xlane.f32.xlu0 %v639
    %v641 = vpop.xlane.xlu0 %640
    %v642 = vsel %vm143, %v638, 0.0
    %643 = vadd.xlane.f32.xlu0 %v642
    %v644 = vpop.xlane.xlu0 %643
    %v645 = vrcp.pop %v641
    %v646 = vrcp.pop %v644
    %647 = vrot.lane.b32.xlu0 %v130, 56
    %v648 = vpop.permute.xlu0 %647
    %v651 = vsel %vm143, %v636, 0
    %653 = vmatprep.subr.mxu0 0.0
    %654 = vmatpush1.msra.mxu0 0.0
    %655 = vmatprep.subr.mxu0 0.0
    %656 = vmatpush1.msra.mxu0 0.0
    %657 = vmatprep.subr.mxu0 0.0
    %658 = vmatpush1.msra.mxu0 0.0
    %659 = vmatprep.subr.mxu0 0.0
    %660 = vmatpush1.msra.mxu0 0.0
    %661 = vmatprep.subr.mxu0 0.0
    %662 = vmatpush1.msra.mxu0 0.0
    %663 = vmatprep.subr.mxu0 0.0
    %664 = vmatpush1.msra.mxu0 0.0
    %665 = vmatprep.subr.mxu0 0.0
    %666 = vmatpush1.msra.mxu0 0.0
    %667 = vmatprep.subr.mxu0 0.0
    %668 = vmatpush1.msra.mxu0 0.0
    %669 = vmatprep.subr.mxu0 0.0
    %670 = vmatpush1.msra.mxu0 0.0
    %671 = vmatprep.subr.mxu0 0.0
    %672 = vmatpush1.msra.mxu0 0.0
    %673 = vmatprep.subr.mxu0 0.0
    %674 = vmatpush1.msra.mxu0 0.0
    %675 = vmatprep.subr.mxu0 0.0
    %676 = vmatpush1.msra.mxu0 0.0
    %677 = vmatprep.subr.mxu0 0.0
    %678 = vmatpush1.msra.mxu0 0.0
    %679 = vmatprep.subr.mxu0 0.0
    %680 = vmatpush1.msra.mxu0 0.0
    %681 = vmatprep.subr.mxu0 0.0
    %682 = vmatpush1.msra.mxu0 0.0
    %683 = vmatprep.subr.mxu0 0.0
    %684 = vmatpush1.msra.mxu0 %v648
    %685 = vmatprep.subr.mxu0 0.0
    %686 = vmatpush2.msra.mxu0 0.0
    %687 = vmatprep.subr.mxu0 0.0
    %688 = vmatpush2.msra.mxu0 0.0
    %689 = vmatprep.subr.mxu0 0.0
    %690 = vmatpush2.msra.mxu0 0.0
    %691 = vmatprep.subr.mxu0 0.0
    %692 = vmatpush2.msra.mxu0 0.0
    %693 = vmatprep.subr.mxu0 0.0
    %694 = vmatpush2.msra.mxu0 0.0
    %695 = vmatprep.subr.mxu0 0.0
    %696 = vmatpush2.msra.mxu0 0.0
    %697 = vmatprep.subr.mxu0 0.0
    %698 = vmatpush2.msra.mxu0 0.0
    %699 = vmatprep.subr.mxu0 0.0
    %700 = vmatpush2.msra.mxu0 0.0
    %701 = vmatprep.subr.mxu0 0.0
    %702 = vmatpush2.msra.mxu0 0.0
    %703 = vmatprep.subr.mxu0 0.0
    %704 = vmatpush2.msra.mxu0 0.0
    %705 = vmatprep.subr.mxu0 0.0
    %706 = vmatpush2.msra.mxu0 0.0
    %707 = vmatprep.subr.mxu0 0.0
    %708 = vmatpush2.msra.mxu0 0.0
    %709 = vmatprep.subr.mxu0 0.0
    %710 = vmatpush2.msra.mxu0 0.0
    %711 = vmatprep.subr.mxu0 0.0
    %712 = vmatpush2.msra.mxu0 0.0
    %713 = vmatprep.subr.mxu0 0.0
    %714 = vmatpush2.msra.mxu0 0.0
    %715 = vmatprep.subr.mxu0 0.0
    %716 = vmatpush2.msra.mxu0 0.0
    %717 = vmatprep.mubr.f32.mxu0 0.0
    %718 = vmatmul.mubr.f32.gmra.mxu0 %v651
    %v719 = vpop.f32.mrf.mxu0
    %v720 = vadd.f32 0.0, %v719
    %v721 = vpop.f32.mrf.mxu0
    %722 = vdwg.mxu0
    %723 = vrot.lane.b32.xlu0 %v135, 56
    %v724 = vpop.permute.xlu0 %723
    %v727 = vsel %vm143, %v638, 0
    %729 = vmatprep.subr.mxu0 0.0
    %730 = vmatpush1.msra.mxu0 0.0
    %731 = vmatprep.subr.mxu0 0.0
    %732 = vmatpush1.msra.mxu0 0.0
    %733 = vmatprep.subr.mxu0 0.0
    %734 = vmatpush1.msra.mxu0 0.0
    %735 = vmatprep.subr.mxu0 0.0
    %736 = vmatpush1.msra.mxu0 0.0
    %737 = vmatprep.subr.mxu0 0.0
    %738 = vmatpush1.msra.mxu0 0.0
    %739 = vmatprep.subr.mxu0 0.0
    %740 = vmatpush1.msra.mxu0 0.0
    %741 = vmatprep.subr.mxu0 0.0
    %742 = vmatpush1.msra.mxu0 0.0
    %743 = vmatprep.subr.mxu0 0.0
    %744 = vmatpush1.msra.mxu0 0.0
    %745 = vmatprep.subr.mxu0 0.0
    %746 = vmatpush1.msra.mxu0 0.0
    %747 = vmatprep.subr.mxu0 0.0
    %748 = vmatpush1.msra.mxu0 0.0
    %749 = vmatprep.subr.mxu0 0.0
    %750 = vmatpush1.msra.mxu0 0.0
    %751 = vmatprep.subr.mxu0 0.0
    %752 = vmatpush1.msra.mxu0 0.0
    %753 = vmatprep.subr.mxu0 0.0
    %754 = vmatpush1.msra.mxu0 0.0
    %755 = vmatprep.subr.mxu0 0.0
    %756 = vmatpush1.msra.mxu0 0.0
    %757 = vmatprep.subr.mxu0 0.0
    %758 = vmatpush1.msra.mxu0 0.0
    %759 = vmatprep.subr.mxu0 0.0
    %760 = vmatpush1.msra.mxu0 %v724
    %761 = vmatprep.subr.mxu0 0.0
    %762 = vmatpush2.msra.mxu0 0.0
    %763 = vmatprep.subr.mxu0 0.0
    %764 = vmatpush2.msra.mxu0 0.0
    %765 = vmatprep.subr.mxu0 0.0
    %766 = vmatpush2.msra.mxu0 0.0
    %767 = vmatprep.subr.mxu0 0.0
    %768 = vmatpush2.msra.mxu0 0.0
    %769 = vmatprep.subr.mxu0 0.0
    %770 = vmatpush2.msra.mxu0 0.0
    %771 = vmatprep.subr.mxu0 0.0
    %772 = vmatpush2.msra.mxu0 0.0
    %773 = vmatprep.subr.mxu0 0.0
    %774 = vmatpush2.msra.mxu0 0.0
    %775 = vmatprep.subr.mxu0 0.0
    %776 = vmatpush2.msra.mxu0 0.0
    %777 = vmatprep.subr.mxu0 0.0
    %778 = vmatpush2.msra.mxu0 0.0
    %779 = vmatprep.subr.mxu0 0.0
    %780 = vmatpush2.msra.mxu0 0.0
    %781 = vmatprep.subr.mxu0 0.0
    %782 = vmatpush2.msra.mxu0 0.0
    %783 = vmatprep.subr.mxu0 0.0
    %784 = vmatpush2.msra.mxu0 0.0
    %785 = vmatprep.subr.mxu0 0.0
    %786 = vmatpush2.msra.mxu0 0.0
    %787 = vmatprep.subr.mxu0 0.0
    %788 = vmatpush2.msra.mxu0 0.0
    %789 = vmatprep.subr.mxu0 0.0
    %790 = vmatpush2.msra.mxu0 0.0
    %791 = vmatprep.subr.mxu0 0.0
    %792 = vmatpush2.msra.mxu0 0.0
    %793 = vmatprep.mubr.f32.mxu0 0.0
    %794 = vmatmul.mubr.f32.gmra.mxu0 %v727
    %v795 = vpop.f32.mrf.mxu0
    %v796 = vadd.f32 0.0, %v795
    %v797 = vpop.f32.mrf.mxu0
    %798 = vdwg.mxu0
    %v799 = vmul.f32 %v720, %v645
    %v800 = vmul.f32 %v796, %v646
    %801 = vrot.lane.b32.xlu0 %v138, 112
    %v802 = vpop.permute.xlu0 %801
    %803 = vrot.lane.b32.xlu0 %v130, 80
    %v804 = vpop.permute.xlu0 %803
    %v805 = vsel %vm143, %v802, 0
    %v807 = vsel %vm143, %v804, 0
    %809 = vmatprep.subr.mxu0 0.0
    %810 = vmatpush1.xpose.msra.mxu0 0.0
    %811 = vmatprep.subr.mxu0 0.0
    %812 = vmatpush1.xpose.msra.mxu0 0.0
    %813 = vmatprep.subr.mxu0 0.0
    %814 = vmatpush1.xpose.msra.mxu0 0.0
    %815 = vmatprep.subr.mxu0 0.0
    %816 = vmatpush1.xpose.msra.mxu0 0.0
    %817 = vmatprep.subr.mxu0 0.0
    %818 = vmatpush1.xpose.msra.mxu0 0.0
    %819 = vmatprep.subr.mxu0 0.0
    %820 = vmatpush1.xpose.msra.mxu0 0.0
    %821 = vmatprep.subr.mxu0 0.0
    %822 = vmatpush1.xpose.msra.mxu0 0.0
    %823 = vmatprep.subr.mxu0 0.0
    %824 = vmatpush1.xpose.msra.mxu0 0.0
    %825 = vmatprep.subr.mxu0 0.0
    %826 = vmatpush1.xpose.msra.mxu0 0.0
    %827 = vmatprep.subr.mxu0 0.0
    %828 = vmatpush1.xpose.msra.mxu0 0.0
    %829 = vmatprep.subr.mxu0 0.0
    %830 = vmatpush1.xpose.msra.mxu0 0.0
    %831 = vmatprep.subr.mxu0 0.0
    %832 = vmatpush1.xpose.msra.mxu0 0.0
    %833 = vmatprep.subr.mxu0 0.0
    %834 = vmatpush1.xpose.msra.mxu0 0.0
    %835 = vmatprep.subr.mxu0 0.0
    %836 = vmatpush1.xpose.msra.mxu0 0.0
    %837 = vmatprep.subr.mxu0 0.0
    %838 = vmatpush1.xpose.msra.mxu0 0.0
    %839 = vmatprep.subr.mxu0 0.0
    %840 = vmatpush1.xpose.msra.mxu0 %v807
    %841 = vmatprep.subr.mxu0 0.0
    %842 = vmatpush2.xpose.msra.mxu0 0.0
    %843 = vmatprep.subr.mxu0 0.0
    %844 = vmatpush2.xpose.msra.mxu0 0.0
    %845 = vmatprep.subr.mxu0 0.0
    %846 = vmatpush2.xpose.msra.mxu0 0.0
    %847 = vmatprep.subr.mxu0 0.0
    %848 = vmatpush2.xpose.msra.mxu0 0.0
    %849 = vmatprep.subr.mxu0 0.0
    %850 = vmatpush2.xpose.msra.mxu0 0.0
    %851 = vmatprep.subr.mxu0 0.0
    %852 = vmatpush2.xpose.msra.mxu0 0.0
    %853 = vmatprep.subr.mxu0 0.0
    %854 = vmatpush2.xpose.msra.mxu0 0.0
    %855 = vmatprep.subr.mxu0 0.0
    %856 = vmatpush2.xpose.msra.mxu0 0.0
    %857 = vmatprep.subr.mxu0 0.0
    %858 = vmatpush2.xpose.msra.mxu0 0.0
    %859 = vmatprep.subr.mxu0 0.0
    %860 = vmatpush2.xpose.msra.mxu0 0.0
    %861 = vmatprep.subr.mxu0 0.0
    %862 = vmatpush2.xpose.msra.mxu0 0.0
    %863 = vmatprep.subr.mxu0 0.0
    %864 = vmatpush2.xpose.msra.mxu0 0.0
    %865 = vmatprep.subr.mxu0 0.0
    %866 = vmatpush2.xpose.msra.mxu0 0.0
    %867 = vmatprep.subr.mxu0 0.0
    %868 = vmatpush2.xpose.msra.mxu0 0.0
    %869 = vmatprep.subr.mxu0 0.0
    %870 = vmatpush2.xpose.msra.mxu0 0.0
    %871 = vmatprep.subr.mxu0 0.0
    %872 = vmatpush2.xpose.msra.mxu0 0.0
    %873 = vmatprep.mubr.f32.mxu0 0.0
    %874 = vmatmul.mubr.f32.gmra.mxu0 %v805
    %v875 = vpop.f32.mrf.mxu0
    %v876 = vadd.f32 0.0, %v875
    %v877 = vpop.f32.mrf.mxu0
    %878 = vdwg.mxu0
    %879 = vrot.lane.b32.xlu0 %v139, 112
    %v880 = vpop.permute.xlu0 %879
    %881 = vrot.lane.b32.xlu0 %v135, 80
    %v882 = vpop.permute.xlu0 %881
    %v883 = vsel %vm143, %v880, 0
    %v885 = vsel %vm143, %v882, 0
    %887 = vmatprep.subr.mxu0 0.0
    %888 = vmatpush1.xpose.msra.mxu0 0.0
    %889 = vmatprep.subr.mxu0 0.0
    %890 = vmatpush1.xpose.msra.mxu0 0.0
    %891 = vmatprep.subr.mxu0 0.0
    %892 = vmatpush1.xpose.msra.mxu0 0.0
    %893 = vmatprep.subr.mxu0 0.0
    %894 = vmatpush1.xpose.msra.mxu0 0.0
    %895 = vmatprep.subr.mxu0 0.0
    %896 = vmatpush1.xpose.msra.mxu0 0.0
    %897 = vmatprep.subr.mxu0 0.0
    %898 = vmatpush1.xpose.msra.mxu0 0.0
    %899 = vmatprep.subr.mxu0 0.0
    %900 = vmatpush1.xpose.msra.mxu0 0.0
    %901 = vmatprep.subr.mxu0 0.0
    %902 = vmatpush1.xpose.msra.mxu0 0.0
    %903 = vmatprep.subr.mxu0 0.0
    %904 = vmatpush1.xpose.msra.mxu0 0.0
    %905 = vmatprep.subr.mxu0 0.0
    %906 = vmatpush1.xpose.msra.mxu0 0.0
    %907 = vmatprep.subr.mxu0 0.0
    %908 = vmatpush1.xpose.msra.mxu0 0.0
    %909 = vmatprep.subr.mxu0 0.0
    %910 = vmatpush1.xpose.msra.mxu0 0.0
    %911 = vmatprep.subr.mxu0 0.0
    %912 = vmatpush1.xpose.msra.mxu0 0.0
    %913 = vmatprep.subr.mxu0 0.0
    %914 = vmatpush1.xpose.msra.mxu0 0.0
    %915 = vmatprep.subr.mxu0 0.0
    %916 = vmatpush1.xpose.msra.mxu0 0.0
    %917 = vmatprep.subr.mxu0 0.0
    %918 = vmatpush1.xpose.msra.mxu0 %v885
    %919 = vmatprep.subr.mxu0 0.0
    %920 = vmatpush2.xpose.msra.mxu0 0.0
    %921 = vmatprep.subr.mxu0 0.0
    %922 = vmatpush2.xpose.msra.mxu0 0.0
    %923 = vmatprep.subr.mxu0 0.0
    %924 = vmatpush2.xpose.msra.mxu0 0.0
    %925 = vmatprep.subr.mxu0 0.0
    %926 = vmatpush2.xpose.msra.mxu0 0.0
    %927 = vmatprep.subr.mxu0 0.0
    %928 = vmatpush2.xpose.msra.mxu0 0.0
    %929 = vmatprep.subr.mxu0 0.0
    %930 = vmatpush2.xpose.msra.mxu0 0.0
    %931 = vmatprep.subr.mxu0 0.0
    %932 = vmatpush2.xpose.msra.mxu0 0.0
    %933 = vmatprep.subr.mxu0 0.0
    %934 = vmatpush2.xpose.msra.mxu0 0.0
    %935 = vmatprep.subr.mxu0 0.0
    %936 = vmatpush2.xpose.msra.mxu0 0.0
    %937 = vmatprep.subr.mxu0 0.0
    %938 = vmatpush2.xpose.msra.mxu0 0.0
    %939 = vmatprep.subr.mxu0 0.0
    %940 = vmatpush2.xpose.msra.mxu0 0.0
    %941 = vmatprep.subr.mxu0 0.0
    %942 = vmatpush2.xpose.msra.mxu0 0.0
    %943 = vmatprep.subr.mxu0 0.0
    %944 = vmatpush2.xpose.msra.mxu0 0.0
    %945 = vmatprep.subr.mxu0 0.0
    %946 = vmatpush2.xpose.msra.mxu0 0.0
    %947 = vmatprep.subr.mxu0 0.0
    %948 = vmatpush2.xpose.msra.mxu0 0.0
    %949 = vmatprep.subr.mxu0 0.0
    %950 = vmatpush2.xpose.msra.mxu0 0.0
    %951 = vmatprep.mubr.f32.mxu0 0.0
    %952 = vmatmul.mubr.f32.gmra.mxu0 %v883
    %v953 = vpop.f32.mrf.mxu0
    %v954 = vadd.f32 0.0, %v953
    %v955 = vpop.f32.mrf.mxu0
    %956 = vdwg.mxu0
    %v957 = vsel %vm143, %v876, -inf
    %958 = vmax.xlane.f32.xlu0 %v957
    %v959 = vpop.xlane.xlu0 %958
    %v960 = vsel %vm143, %v954, -inf
    %961 = vmax.xlane.f32.xlu0 %v960
    %v962 = vpop.xlane.xlu0 %961
    %v963 = vsub.f32 %v876, %v959
    %v964 = vsub.f32 %v954, %v962
    %v965 = vmul.f32 %v963, 1.442695
    %v966 = vpow.pop %v965
    %v967 = vmul.f32 %v964, 1.442695
    %v968 = vpow.pop %v967
    %v969 = vsel %vm143, %v966, 0.0
    %970 = vadd.xlane.f32.xlu0 %v969
    %v971 = vpop.xlane.xlu0 %970
    %v972 = vsel %vm143, %v968, 0.0
    %973 = vadd.xlane.f32.xlu0 %v972
    %v974 = vpop.xlane.xlu0 %973
    %v975 = vrcp.pop %v971
    %v976 = vrcp.pop %v974
    %977 = vrot.lane.b32.xlu0 %v130, 48
    %v978 = vpop.permute.xlu0 %977
    %v981 = vsel %vm143, %v966, 0
    %983 = vmatprep.subr.mxu0 0.0
    %984 = vmatpush1.msra.mxu0 0.0
    %985 = vmatprep.subr.mxu0 0.0
    %986 = vmatpush1.msra.mxu0 0.0
    %987 = vmatprep.subr.mxu0 0.0
    %988 = vmatpush1.msra.mxu0 0.0
    %989 = vmatprep.subr.mxu0 0.0
    %990 = vmatpush1.msra.mxu0 0.0
    %991 = vmatprep.subr.mxu0 0.0
    %992 = vmatpush1.msra.mxu0 0.0
    %993 = vmatprep.subr.mxu0 0.0
    %994 = vmatpush1.msra.mxu0 0.0
    %995 = vmatprep.subr.mxu0 0.0
    %996 = vmatpush1.msra.mxu0 0.0
    %997 = vmatprep.subr.mxu0 0.0
    %998 = vmatpush1.msra.mxu0 0.0
    %999 = vmatprep.subr.mxu0 0.0
    %1000 = vmatpush1.msra.mxu0 0.0
    %1001 = vmatprep.subr.mxu0 0.0
    %1002 = vmatpush1.msra.mxu0 0.0
    %1003 = vmatprep.subr.mxu0 0.0
    %1004 = vmatpush1.msra.mxu0 0.0
    %1005 = vmatprep.subr.mxu0 0.0
    %1006 = vmatpush1.msra.mxu0 0.0
    %1007 = vmatprep.subr.mxu0 0.0
    %1008 = vmatpush1.msra.mxu0 0.0
    %1009 = vmatprep.subr.mxu0 0.0
    %1010 = vmatpush1.msra.mxu0 0.0
    %1011 = vmatprep.subr.mxu0 0.0
    %1012 = vmatpush1.msra.mxu0 0.0
    %1013 = vmatprep.subr.mxu0 0.0
    %1014 = vmatpush1.msra.mxu0 %v978
    %1015 = vmatprep.subr.mxu0 0.0
    %1016 = vmatpush2.msra.mxu0 0.0
    %1017 = vmatprep.subr.mxu0 0.0
    %1018 = vmatpush2.msra.mxu0 0.0
    %1019 = vmatprep.subr.mxu0 0.0
    %1020 = vmatpush2.msra.mxu0 0.0
    %1021 = vmatprep.subr.mxu0 0.0
    %1022 = vmatpush2.msra.mxu0 0.0
    %1023 = vmatprep.subr.mxu0 0.0
    %1024 = vmatpush2.msra.mxu0 0.0
    %1025 = vmatprep.subr.mxu0 0.0
    %1026 = vmatpush2.msra.mxu0 0.0
    %1027 = vmatprep.subr.mxu0 0.0
    %1028 = vmatpush2.msra.mxu0 0.0
    %1029 = vmatprep.subr.mxu0 0.0
    %1030 = vmatpush2.msra.mxu0 0.0
    %1031 = vmatprep.subr.mxu0 0.0
    %1032 = vmatpush2.msra.mxu0 0.0
    %1033 = vmatprep.subr.mxu0 0.0
    %1034 = vmatpush2.msra.mxu0 0.0
    %1035 = vmatprep.subr.mxu0 0.0
    %1036 = vmatpush2.msra.mxu0 0.0
    %1037 = vmatprep.subr.mxu0 0.0
    %1038 = vmatpush2.msra.mxu0 0.0
    %1039 = vmatprep.subr.mxu0 0.0
    %1040 = vmatpush2.msra.mxu0 0.0
    %1041 = vmatprep.subr.mxu0 0.0
    %1042 = vmatpush2.msra.mxu0 0.0
    %1043 = vmatprep.subr.mxu0 0.0
    %1044 = vmatpush2.msra.mxu0 0.0
    %1045 = vmatprep.subr.mxu0 0.0
    %1046 = vmatpush2.msra.mxu0 0.0
    %1047 = vmatprep.mubr.f32.mxu0 0.0
    %1048 = vmatmul.mubr.f32.gmra.mxu0 %v981
    %v1049 = vpop.f32.mrf.mxu0
    %v1050 = vadd.f32 0.0, %v1049
    %v1051 = vpop.f32.mrf.mxu0
    %1052 = vdwg.mxu0
    %1053 = vrot.lane.b32.xlu0 %v135, 48
    %v1054 = vpop.permute.xlu0 %1053
    %v1057 = vsel %vm143, %v968, 0
    %1059 = vmatprep.subr.mxu0 0.0
    %1060 = vmatpush1.msra.mxu0 0.0
    %1061 = vmatprep.subr.mxu0 0.0
    %1062 = vmatpush1.msra.mxu0 0.0
    %1063 = vmatprep.subr.mxu0 0.0
    %1064 = vmatpush1.msra.mxu0 0.0
    %1065 = vmatprep.subr.mxu0 0.0
    %1066 = vmatpush1.msra.mxu0 0.0
    %1067 = vmatprep.subr.mxu0 0.0
    %1068 = vmatpush1.msra.mxu0 0.0
    %1069 = vmatprep.subr.mxu0 0.0
    %1070 = vmatpush1.msra.mxu0 0.0
    %1071 = vmatprep.subr.mxu0 0.0
    %1072 = vmatpush1.msra.mxu0 0.0
    %1073 = vmatprep.subr.mxu0 0.0
    %1074 = vmatpush1.msra.mxu0 0.0
    %1075 = vmatprep.subr.mxu0 0.0
    %1076 = vmatpush1.msra.mxu0 0.0
    %1077 = vmatprep.subr.mxu0 0.0
    %1078 = vmatpush1.msra.mxu0 0.0
    %1079 = vmatprep.subr.mxu0 0.0
    %1080 = vmatpush1.msra.mxu0 0.0
    %1081 = vmatprep.subr.mxu0 0.0
    %1082 = vmatpush1.msra.mxu0 0.0
    %1083 = vmatprep.subr.mxu0 0.0
    %1084 = vmatpush1.msra.mxu0 0.0
    %1085 = vmatprep.subr.mxu0 0.0
    %1086 = vmatpush1.msra.mxu0 0.0
    %1087 = vmatprep.subr.mxu0 0.0
    %1088 = vmatpush1.msra.mxu0 0.0
    %1089 = vmatprep.subr.mxu0 0.0
    %1090 = vmatpush1.msra.mxu0 %v1054
    %1091 = vmatprep.subr.mxu0 0.0
    %1092 = vmatpush2.msra.mxu0 0.0
    %1093 = vmatprep.subr.mxu0 0.0
    %1094 = vmatpush2.msra.mxu0 0.0
    %1095 = vmatprep.subr.mxu0 0.0
    %1096 = vmatpush2.msra.mxu0 0.0
    %1097 = vmatprep.subr.mxu0 0.0
    %1098 = vmatpush2.msra.mxu0 0.0
    %1099 = vmatprep.subr.mxu0 0.0
    %1100 = vmatpush2.msra.mxu0 0.0
    %1101 = vmatprep.subr.mxu0 0.0
    %1102 = vmatpush2.msra.mxu0 0.0
    %1103 = vmatprep.subr.mxu0 0.0
    %1104 = vmatpush2.msra.mxu0 0.0
    %1105 = vmatprep.subr.mxu0 0.0
    %1106 = vmatpush2.msra.mxu0 0.0
    %1107 = vmatprep.subr.mxu0 0.0
    %1108 = vmatpush2.msra.mxu0 0.0
    %1109 = vmatprep.subr.mxu0 0.0
    %1110 = vmatpush2.msra.mxu0 0.0
    %1111 = vmatprep.subr.mxu0 0.0
    %1112 = vmatpush2.msra.mxu0 0.0
    %1113 = vmatprep.subr.mxu0 0.0
    %1114 = vmatpush2.msra.mxu0 0.0
    %1115 = vmatprep.subr.mxu0 0.0
    %1116 = vmatpush2.msra.mxu0 0.0
    %1117 = vmatprep.subr.mxu0 0.0
    %1118 = vmatpush2.msra.mxu0 0.0
    %1119 = vmatprep.subr.mxu0 0.0
    %1120 = vmatpush2.msra.mxu0 0.0
    %1121 = vmatprep.subr.mxu0 0.0
    %1122 = vmatpush2.msra.mxu0 0.0
    %1123 = vmatprep.mubr.f32.mxu0 0.0
    %1124 = vmatmul.mubr.f32.gmra.mxu0 %v1057
    %v1125 = vpop.f32.mrf.mxu0
    %v1126 = vadd.f32 0.0, %v1125
    %v1127 = vpop.f32.mrf.mxu0
    %1128 = vdwg.mxu0
    %v1129 = vmul.f32 %v1050, %v975
    %v1130 = vmul.f32 %v1126, %v976
    %1131 = vrot.lane.b32.xlu0 %v138, 104
    %v1132 = vpop.permute.xlu0 %1131
    %1133 = vrot.lane.b32.xlu0 %v130, 72
    %v1134 = vpop.permute.xlu0 %1133
    %v1135 = vsel %vm143, %v1132, 0
    %v1137 = vsel %vm143, %v1134, 0
    %1139 = vmatprep.subr.mxu0 0.0
    %1140 = vmatpush1.xpose.msra.mxu0 0.0
    %1141 = vmatprep.subr.mxu0 0.0
    %1142 = vmatpush1.xpose.msra.mxu0 0.0
    %1143 = vmatprep.subr.mxu0 0.0
    %1144 = vmatpush1.xpose.msra.mxu0 0.0
    %1145 = vmatprep.subr.mxu0 0.0
    %1146 = vmatpush1.xpose.msra.mxu0 0.0
    %1147 = vmatprep.subr.mxu0 0.0
    %1148 = vmatpush1.xpose.msra.mxu0 0.0
    %1149 = vmatprep.subr.mxu0 0.0
    %1150 = vmatpush1.xpose.msra.mxu0 0.0
    %1151 = vmatprep.subr.mxu0 0.0
    %1152 = vmatpush1.xpose.msra.mxu0 0.0
    %1153 = vmatprep.subr.mxu0 0.0
    %1154 = vmatpush1.xpose.msra.mxu0 0.0
    %1155 = vmatprep.subr.mxu0 0.0
    %1156 = vmatpush1.xpose.msra.mxu0 0.0
    %1157 = vmatprep.subr.mxu0 0.0
    %1158 = vmatpush1.xpose.msra.mxu0 0.0
    %1159 = vmatprep.subr.mxu0 0.0
    %1160 = vmatpush1.xpose.msra.mxu0 0.0
    %1161 = vmatprep.subr.mxu0 0.0
    %1162 = vmatpush1.xpose.msra.mxu0 0.0
    %1163 = vmatprep.subr.mxu0 0.0
    %1164 = vmatpush1.xpose.msra.mxu0 0.0
    %1165 = vmatprep.subr.mxu0 0.0
    %1166 = vmatpush1.xpose.msra.mxu0 0.0
    %1167 = vmatprep.subr.mxu0 0.0
    %1168 = vmatpush1.xpose.msra.mxu0 0.0
    %1169 = vmatprep.subr.mxu0 0.0
    %1170 = vmatpush1.xpose.msra.mxu0 %v1137
    %1171 = vmatprep.subr.mxu0 0.0
    %1172 = vmatpush2.xpose.msra.mxu0 0.0
    %1173 = vmatprep.subr.mxu0 0.0
    %1174 = vmatpush2.xpose.msra.mxu0 0.0
    %1175 = vmatprep.subr.mxu0 0.0
    %1176 = vmatpush2.xpose.msra.mxu0 0.0
    %1177 = vmatprep.subr.mxu0 0.0
    %1178 = vmatpush2.xpose.msra.mxu0 0.0
    %1179 = vmatprep.subr.mxu0 0.0
    %1180 = vmatpush2.xpose.msra.mxu0 0.0
    %1181 = vmatprep.subr.mxu0 0.0
    %1182 = vmatpush2.xpose.msra.mxu0 0.0
    %1183 = vmatprep.subr.mxu0 0.0
    %1184 = vmatpush2.xpose.msra.mxu0 0.0
    %1185 = vmatprep.subr.mxu0 0.0
    %1186 = vmatpush2.xpose.msra.mxu0 0.0
    %1187 = vmatprep.subr.mxu0 0.0
    %1188 = vmatpush2.xpose.msra.mxu0 0.0
    %1189 = vmatprep.subr.mxu0 0.0
    %1190 = vmatpush2.xpose.msra.mxu0 0.0
    %1191 = vmatprep.subr.mxu0 0.0
    %1192 = vmatpush2.xpose.msra.mxu0 0.0
    %1193 = vmatprep.subr.mxu0 0.0
    %1194 = vmatpush2.xpose.msra.mxu0 0.0
    %1195 = vmatprep.subr.mxu0 0.0
    %1196 = vmatpush2.xpose.msra.mxu0 0.0
    %1197 = vmatprep.subr.mxu0 0.0
    %1198 = vmatpush2.xpose.msra.mxu0 0.0
    %1199 = vmatprep.subr.mxu0 0.0
    %1200 = vmatpush2.xpose.msra.mxu0 0.0
    %1201 = vmatprep.subr.mxu0 0.0
    %1202 = vmatpush2.xpose.msra.mxu0 0.0
    %1203 = vmatprep.mubr.f32.mxu0 0.0
    %1204 = vmatmul.mubr.f32.gmra.mxu0 %v1135
    %v1205 = vpop.f32.mrf.mxu0
    %v1206 = vadd.f32 0.0, %v1205
    %v1207 = vpop.f32.mrf.mxu0
    %1208 = vdwg.mxu0
    %1209 = vrot.lane.b32.xlu0 %v139, 104
    %v1210 = vpop.permute.xlu0 %1209
    %1211 = vrot.lane.b32.xlu0 %v135, 72
    %v1212 = vpop.permute.xlu0 %1211
    %v1213 = vsel %vm143, %v1210, 0
    %v1215 = vsel %vm143, %v1212, 0
    %1217 = vmatprep.subr.mxu0 0.0
    %1218 = vmatpush1.xpose.msra.mxu0 0.0
    %1219 = vmatprep.subr.mxu0 0.0
    %1220 = vmatpush1.xpose.msra.mxu0 0.0
    %1221 = vmatprep.subr.mxu0 0.0
    %1222 = vmatpush1.xpose.msra.mxu0 0.0
    %1223 = vmatprep.subr.mxu0 0.0
    %1224 = vmatpush1.xpose.msra.mxu0 0.0
    %1225 = vmatprep.subr.mxu0 0.0
    %1226 = vmatpush1.xpose.msra.mxu0 0.0
    %1227 = vmatprep.subr.mxu0 0.0
    %1228 = vmatpush1.xpose.msra.mxu0 0.0
    %1229 = vmatprep.subr.mxu0 0.0
    %1230 = vmatpush1.xpose.msra.mxu0 0.0
    %1231 = vmatprep.subr.mxu0 0.0
    %1232 = vmatpush1.xpose.msra.mxu0 0.0
    %1233 = vmatprep.subr.mxu0 0.0
    %1234 = vmatpush1.xpose.msra.mxu0 0.0
    %1235 = vmatprep.subr.mxu0 0.0
    %1236 = vmatpush1.xpose.msra.mxu0 0.0
    %1237 = vmatprep.subr.mxu0 0.0
    %1238 = vmatpush1.xpose.msra.mxu0 0.0
    %1239 = vmatprep.subr.mxu0 0.0
    %1240 = vmatpush1.xpose.msra.mxu0 0.0
    %1241 = vmatprep.subr.mxu0 0.0
    %1242 = vmatpush1.xpose.msra.mxu0 0.0
    %1243 = vmatprep.subr.mxu0 0.0
    %1244 = vmatpush1.xpose.msra.mxu0 0.0
    %1245 = vmatprep.subr.mxu0 0.0
    %1246 = vmatpush1.xpose.msra.mxu0 0.0
    %1247 = vmatprep.subr.mxu0 0.0
    %1248 = vmatpush1.xpose.msra.mxu0 %v1215
    %1249 = vmatprep.subr.mxu0 0.0
    %1250 = vmatpush2.xpose.msra.mxu0 0.0
    %1251 = vmatprep.subr.mxu0 0.0
    %1252 = vmatpush2.xpose.msra.mxu0 0.0
    %1253 = vmatprep.subr.mxu0 0.0
    %1254 = vmatpush2.xpose.msra.mxu0 0.0
    %1255 = vmatprep.subr.mxu0 0.0
    %1256 = vmatpush2.xpose.msra.mxu0 0.0
    %1257 = vmatprep.subr.mxu0 0.0
    %1258 = vmatpush2.xpose.msra.mxu0 0.0
    %1259 = vmatprep.subr.mxu0 0.0
    %1260 = vmatpush2.xpose.msra.mxu0 0.0
    %1261 = vmatprep.subr.mxu0 0.0
    %1262 = vmatpush2.xpose.msra.mxu0 0.0
    %1263 = vmatprep.subr.mxu0 0.0
    %1264 = vmatpush2.xpose.msra.mxu0 0.0
    %1265 = vmatprep.subr.mxu0 0.0
    %1266 = vmatpush2.xpose.msra.mxu0 0.0
    %1267 = vmatprep.subr.mxu0 0.0
    %1268 = vmatpush2.xpose.msra.mxu0 0.0
    %1269 = vmatprep.subr.mxu0 0.0
    %1270 = vmatpush2.xpose.msra.mxu0 0.0
    %1271 = vmatprep.subr.mxu0 0.0
    %1272 = vmatpush2.xpose.msra.mxu0 0.0
    %1273 = vmatprep.subr.mxu0 0.0
    %1274 = vmatpush2.xpose.msra.mxu0 0.0
    %1275 = vmatprep.subr.mxu0 0.0
    %1276 = vmatpush2.xpose.msra.mxu0 0.0
    %1277 = vmatprep.subr.mxu0 0.0
    %1278 = vmatpush2.xpose.msra.mxu0 0.0
    %1279 = vmatprep.subr.mxu0 0.0
    %1280 = vmatpush2.xpose.msra.mxu0 0.0
    %1281 = vmatprep.mubr.f32.mxu0 0.0
    %1282 = vmatmul.mubr.f32.gmra.mxu0 %v1213
    %v1283 = vpop.f32.mrf.mxu0
    %v1284 = vadd.f32 0.0, %v1283
    %v1285 = vpop.f32.mrf.mxu0
    %1286 = vdwg.mxu0
    %v1287 = vsel %vm143, %v1206, -inf
    %1288 = vmax.xlane.f32.xlu0 %v1287
    %v1289 = vpop.xlane.xlu0 %1288
    %v1290 = vsel %vm143, %v1284, -inf
    %1291 = vmax.xlane.f32.xlu0 %v1290
    %v1292 = vpop.xlane.xlu0 %1291
    %v1293 = vsub.f32 %v1206, %v1289
    %v1294 = vsub.f32 %v1284, %v1292
    %v1295 = vmul.f32 %v1293, 1.442695
    %v1296 = vpow.pop %v1295
    %v1297 = vmul.f32 %v1294, 1.442695
    %v1298 = vpow.pop %v1297
    %v1299 = vsel %vm143, %v1296, 0.0
    %1300 = vadd.xlane.f32.xlu0 %v1299
    %v1301 = vpop.xlane.xlu0 %1300
    %v1302 = vsel %vm143, %v1298, 0.0
    %1303 = vadd.xlane.f32.xlu0 %v1302
    %v1304 = vpop.xlane.xlu0 %1303
    %v1305 = vrcp.pop %v1301
    %v1306 = vrcp.pop %v1304
    %1307 = vrot.lane.b32.xlu0 %v130, 40
    %v1308 = vpop.permute.xlu0 %1307
    %v1311 = vsel %vm143, %v1296, 0
    %1313 = vmatprep.subr.mxu0 0.0
    %1314 = vmatpush1.msra.mxu0 0.0
    %1315 = vmatprep.subr.mxu0 0.0
    %1316 = vmatpush1.msra.mxu0 0.0
    %1317 = vmatprep.subr.mxu0 0.0
    %1318 = vmatpush1.msra.mxu0 0.0
    %1319 = vmatprep.subr.mxu0 0.0
    %1320 = vmatpush1.msra.mxu0 0.0
    %1321 = vmatprep.subr.mxu0 0.0
    %1322 = vmatpush1.msra.mxu0 0.0
    %1323 = vmatprep.subr.mxu0 0.0
    %1324 = vmatpush1.msra.mxu0 0.0
    %1325 = vmatprep.subr.mxu0 0.0
    %1326 = vmatpush1.msra.mxu0 0.0
    %1327 = vmatprep.subr.mxu0 0.0
    %1328 = vmatpush1.msra.mxu0 0.0
    %1329 = vmatprep.subr.mxu0 0.0
    %1330 = vmatpush1.msra.mxu0 0.0
    %1331 = vmatprep.subr.mxu0 0.0
    %1332 = vmatpush1.msra.mxu0 0.0
    %1333 = vmatprep.subr.mxu0 0.0
    %1334 = vmatpush1.msra.mxu0 0.0
    %1335 = vmatprep.subr.mxu0 0.0
    %1336 = vmatpush1.msra.mxu0 0.0
    %1337 = vmatprep.subr.mxu0 0.0
    %1338 = vmatpush1.msra.mxu0 0.0
    %1339 = vmatprep.subr.mxu0 0.0
    %1340 = vmatpush1.msra.mxu0 0.0
    %1341 = vmatprep.subr.mxu0 0.0
    %1342 = vmatpush1.msra.mxu0 0.0
    %1343 = vmatprep.subr.mxu0 0.0
    %1344 = vmatpush1.msra.mxu0 %v1308
    %1345 = vmatprep.subr.mxu0 0.0
    %1346 = vmatpush2.msra.mxu0 0.0
    %1347 = vmatprep.subr.mxu0 0.0
    %1348 = vmatpush2.msra.mxu0 0.0
    %1349 = vmatprep.subr.mxu0 0.0
    %1350 = vmatpush2.msra.mxu0 0.0
    %1351 = vmatprep.subr.mxu0 0.0
    %1352 = vmatpush2.msra.mxu0 0.0
    %1353 = vmatprep.subr.mxu0 0.0
    %1354 = vmatpush2.msra.mxu0 0.0
    %1355 = vmatprep.subr.mxu0 0.0
    %1356 = vmatpush2.msra.mxu0 0.0
    %1357 = vmatprep.subr.mxu0 0.0
    %1358 = vmatpush2.msra.mxu0 0.0
    %1359 = vmatprep.subr.mxu0 0.0
    %1360 = vmatpush2.msra.mxu0 0.0
    %1361 = vmatprep.subr.mxu0 0.0
    %1362 = vmatpush2.msra.mxu0 0.0
    %1363 = vmatprep.subr.mxu0 0.0
    %1364 = vmatpush2.msra.mxu0 0.0
    %1365 = vmatprep.subr.mxu0 0.0
    %1366 = vmatpush2.msra.mxu0 0.0
    %1367 = vmatprep.subr.mxu0 0.0
    %1368 = vmatpush2.msra.mxu0 0.0
    %1369 = vmatprep.subr.mxu0 0.0
    %1370 = vmatpush2.msra.mxu0 0.0
    %1371 = vmatprep.subr.mxu0 0.0
    %1372 = vmatpush2.msra.mxu0 0.0
    %1373 = vmatprep.subr.mxu0 0.0
    %1374 = vmatpush2.msra.mxu0 0.0
    %1375 = vmatprep.subr.mxu0 0.0
    %1376 = vmatpush2.msra.mxu0 0.0
    %1377 = vmatprep.mubr.f32.mxu0 0.0
    %1378 = vmatmul.mubr.f32.gmra.mxu0 %v1311
    %v1379 = vpop.f32.mrf.mxu0
    %v1380 = vadd.f32 0.0, %v1379
    %v1381 = vpop.f32.mrf.mxu0
    %1382 = vdwg.mxu0
    %1383 = vrot.lane.b32.xlu0 %v135, 40
    %v1384 = vpop.permute.xlu0 %1383
    %v1387 = vsel %vm143, %v1298, 0
    %1389 = vmatprep.subr.mxu0 0.0
    %1390 = vmatpush1.msra.mxu0 0.0
    %1391 = vmatprep.subr.mxu0 0.0
    %1392 = vmatpush1.msra.mxu0 0.0
    %1393 = vmatprep.subr.mxu0 0.0
    %1394 = vmatpush1.msra.mxu0 0.0
    %1395 = vmatprep.subr.mxu0 0.0
    %1396 = vmatpush1.msra.mxu0 0.0
    %1397 = vmatprep.subr.mxu0 0.0
    %1398 = vmatpush1.msra.mxu0 0.0
    %1399 = vmatprep.subr.mxu0 0.0
    %1400 = vmatpush1.msra.mxu0 0.0
    %1401 = vmatprep.subr.mxu0 0.0
    %1402 = vmatpush1.msra.mxu0 0.0
    %1403 = vmatprep.subr.mxu0 0.0
    %1404 = vmatpush1.msra.mxu0 0.0
    %1405 = vmatprep.subr.mxu0 0.0
    %1406 = vmatpush1.msra.mxu0 0.0
    %1407 = vmatprep.subr.mxu0 0.0
    %1408 = vmatpush1.msra.mxu0 0.0
    %1409 = vmatprep.subr.mxu0 0.0
    %1410 = vmatpush1.msra.mxu0 0.0
    %1411 = vmatprep.subr.mxu0 0.0
    %1412 = vmatpush1.msra.mxu0 0.0
    %1413 = vmatprep.subr.mxu0 0.0
    %1414 = vmatpush1.msra.mxu0 0.0
    %1415 = vmatprep.subr.mxu0 0.0
    %1416 = vmatpush1.msra.mxu0 0.0
    %1417 = vmatprep.subr.mxu0 0.0
    %1418 = vmatpush1.msra.mxu0 0.0
    %1419 = vmatprep.subr.mxu0 0.0
    %1420 = vmatpush1.msra.mxu0 %v1384
    %1421 = vmatprep.subr.mxu0 0.0
    %1422 = vmatpush2.msra.mxu0 0.0
    %1423 = vmatprep.subr.mxu0 0.0
    %1424 = vmatpush2.msra.mxu0 0.0
    %1425 = vmatprep.subr.mxu0 0.0
    %1426 = vmatpush2.msra.mxu0 0.0
    %1427 = vmatprep.subr.mxu0 0.0
    %1428 = vmatpush2.msra.mxu0 0.0
    %1429 = vmatprep.subr.mxu0 0.0
    %1430 = vmatpush2.msra.mxu0 0.0
    %1431 = vmatprep.subr.mxu0 0.0
    %1432 = vmatpush2.msra.mxu0 0.0
    %1433 = vmatprep.subr.mxu0 0.0
    %1434 = vmatpush2.msra.mxu0 0.0
    %1435 = vmatprep.subr.mxu0 0.0
    %1436 = vmatpush2.msra.mxu0 0.0
    %1437 = vmatprep.subr.mxu0 0.0
    %1438 = vmatpush2.msra.mxu0 0.0
    %1439 = vmatprep.subr.mxu0 0.0
    %1440 = vmatpush2.msra.mxu0 0.0
    %1441 = vmatprep.subr.mxu0 0.0
    %1442 = vmatpush2.msra.mxu0 0.0
    %1443 = vmatprep.subr.mxu0 0.0
    %1444 = vmatpush2.msra.mxu0 0.0
    %1445 = vmatprep.subr.mxu0 0.0
    %1446 = vmatpush2.msra.mxu0 0.0
    %1447 = vmatprep.subr.mxu0 0.0
    %1448 = vmatpush2.msra.mxu0 0.0
    %1449 = vmatprep.subr.mxu0 0.0
    %1450 = vmatpush2.msra.mxu0 0.0
    %1451 = vmatprep.subr.mxu0 0.0
    %1452 = vmatpush2.msra.mxu0 0.0
    %1453 = vmatprep.mubr.f32.mxu0 0.0
    %1454 = vmatmul.mubr.f32.gmra.mxu0 %v1387
    %v1455 = vpop.f32.mrf.mxu0
    %v1456 = vadd.f32 0.0, %v1455
    %v1457 = vpop.f32.mrf.mxu0
    %1458 = vdwg.mxu0
    %v1459 = vmul.f32 %v1380, %v1305
    %v1460 = vmul.f32 %v1456, %v1306
    %1463 = vrot.lane.b32.xlu0 %v799, 8
    %v1464 = vpop.permute.xlu0 %1463
    %1465 = vrot.lane.b32.xlu0 %v800, 8
    %v1466 = vpop.permute.xlu0 %1465
    %1471 = vrot.lane.b32.xlu0 %v1129, 16
    %v1472 = vpop.permute.xlu0 %1471
    %1473 = vrot.lane.b32.xlu0 %v1130, 16
    %v1474 = vpop.permute.xlu0 %1473
    %1479 = vrot.lane.b32.xlu0 %v1459, 24
    %v1480 = vpop.permute.xlu0 %1479
    %1481 = vrot.lane.b32.xlu0 %v1460, 24
    %v1482 = vpop.permute.xlu0 %1481
    %v1485 = vsel %vm143, %v469, %v1464
    %v1486 = vsel %vm143, %v470, %v1466
    %vm1487 = vcmask 130048
    %v1488 = vsel %vm1487, %v1485, %v1472
    %v1489 = vsel %vm1487, %v1486, %v1474
    %vm1490 = vcmask 195584
    %v1491 = vsel %vm1490, %v1488, %v1480
    %v1492 = vsel %vm1490, %v1489, %v1482
    %1493 = vst.msk [vmem:[#allocation7] sm:$0xff] %vm56, %v1491
    %1494 = vst.msk [vmem:[#allocation7 + $0x8] sm:$0xff] %vm56, %v1492
    // Predicated region
    $region22: #{tpu_custom_call.1} parent=1 // pred_check
      _
    $region23: #{tpu_custom_call.1} parent=1 // pred_check_branch
      %1496 = sbr.rel (0) target = $region25
    $region24: #{tpu_custom_call.1} parent=1 // pred_region
      %s1498 = ssub.s32 256, 256
      %1499 = vsyncadd [#allocation4], %s1498
      %s1500 = sshll.u32 [#allocation7], 4
      %s1501 = int_to_ptr.vmem [resolvable:$true] %s1500
      %1506 = dma.vmem_to_hbm [thread:$0]  %s1501, 256, %s3, [#allocation4], 128, 128, 8
    $region25: #{tpu_custom_call.1} parent=1 // pred_fallthru
      _
    // Predicated region
    $region26: #{tpu_custom_call.1} parent=1 // pred_check
      _
    $region27: #{tpu_custom_call.1} parent=1 // pred_check_branch
      %1508 = sbr.rel (0) target = $region29
    $region28: #{tpu_custom_call.1} parent=1 // pred_region
      %1509 = dma.done [#allocation4], 256
    $region29: #{tpu_custom_call.1} parent=1 // pred_fallthru
      _
    %1510 = vsyncpa [#allocation3], 1
    %1511 = vsyncpa [#allocation6], 1
    %1512 = vsyncpa [#allocation4], 1

</llo_original>
